<compile_context>
chip_gen: v7x
topology: tpu7x:2x2x1
jax: 0.10.0
libtpu: 0.0.40
codegen_flags: <defaults>
</compile_context>

<pallas_src>
import jax
import jax.numpy as jnp
import numpy as np
from jax.experimental import pallas as pl
from jax.experimental.pallas import tpu as pltpu

WIRES = 2
CIRCUIT_LAYERS = 1   # closed form below assumes the module default (1 layer)
IN_CH = 3            # Qfilter_multichannel uses input channels 0..2
OUT_CH = 3           # Qconv1d concatenates three multichannel filters


def _round_up(x, m):
    return ((x + m - 1) // m) * m


def _make_kernel(dilation, t_tile, halo, out_ch, in_ch):
    win = t_tile + halo
    # cyclic shift so rolled[..., i] == window[..., i + dilation]
    # (positive-shift equivalent of jnp.roll(x, -dilation)); never reads wrapped
    # lanes inside [0, t_tile) because dilation <= halo.
    shift = win - dilation
    aligned = (dilation % 128) == 0   # lane-aligned dilation -> slice, no roll

    def kernel(trig_ref, xm_ref, xh_ref, o_ref):
        # trig_ref: SMEM f32[4*out_ch*in_ch], signs folded on host:
        #           term0=-cos(w0), term1=-sin(w0), term2=cos(w1), term3=-sin(w1)
        # xm_ref:   VMEM f32[in_ch, BS_TILE, t_tile]  time window [j*T, (j+1)*T)
        # xh_ref:   VMEM f32[in_ch, BS_TILE, halo]    halo window [(j+1)*T, ...)
        # o_ref:    VMEM f32[out_ch, BS_TILE, t_tile]
        xw = jnp.concatenate([xm_ref[...], xh_ref[...]], axis=2)  # (in_ch, BS, win)

        # single transcendental pass over the window; both the "a" side and the
        # shifted "b" side are derived from it (halves the sin/cos work)
        sin_w = jnp.sin(xw)
        cos_w = jnp.cos(xw)

        sin_a = sin_w[:, :, :t_tile]
        cos_a = cos_w[:, :, :t_tile]
        if aligned:
            # dilation is a multiple of 128 -> lane-aligned slice, skip the rolls
            sin_b = sin_w[:, :, dilation:dilation + t_tile]
            cos_b = cos_w[:, :, dilation:dilation + t_tile]
        else:
            # dilation shift via XLU roll (separate slot from the VALU hot loop)
            sin_s = pltpu.roll(sin_w, shift, axis=2)
            cos_s = pltpu.roll(cos_w, shift, axis=2)
            sin_b = sin_s[:, :, :t_tile]
            cos_b = cos_s[:, :, :t_tile]

        # per-channel products, computed once and reused for every output channel
        cc = cos_a * cos_b
        ss = sin_a * sin_b

        def tw(term, o, c):  # static scalar read from SMEM
            return trig_ref[(term * out_ch + o) * in_ch + c]

        # 12-feature -> 3-output weighted sum, kept on the VPU (near-minimal:
        # 36 mul + 33 add per position; no f32 FMA on these VPUs).
        for o in range(out_ch):
            acc = None
            for c in range(in_ch):
                contrib = (tw(0, o, c) * sin_a[c]
                           + tw(1, o, c) * cc[c]
                           + tw(2, o, c) * ss[c]
                           + tw(3, o, c) * cos_b[c])
                acc = contrib if acc is None else acc + contrib
            o_ref[o, :, :] = acc           # direct, lane-dense store per channel

    return kernel


def qconv1d(x, q_para, dilation=1, *, bs_tile=32, t_tile=2048):
    """x: (bs, IN_CH, T) float; q_para: (OUT_CH, IN_CH, CIRCUIT_LAYERS, WIRES)."""
    out_ch, in_ch, layers, wires = q_para.shape
    assert layers == CIRCUIT_LAYERS and wires == WIRES
    # TODO(synk): closed form only covers circuit_layers == 1 (the module default).
    bs, c_in, T = x.shape
    assert c_in == in_ch
    assert 1 <= dilation < T
    t_out = T - dilation

    # tile geometry: time tile is a multiple of the (128-aligned) halo
    # TODO(synk): for very large dilation this couples t_tile to the halo; an
    # overlapping-window (element-offset) input spec would decouple them.
    halo = _round_up(dilation, 128)
    t_tile = max(_round_up(t_tile, halo), halo)
    t_tile = min(t_tile, _round_up(t_out, halo))
    nt = pl.cdiv(t_out, t_tile)
    t_out_pad = nt * t_tile

    bs_tile = _round_up(min(bs_tile, _round_up(bs, 8)), 8)
    nb = pl.cdiv(bs, bs_tile)
    bs_pad = nb * bs_tile

    # channels-first so (sublane, lane) = (batch, time) are densely packed;
    # XLA fuses the transpose+pad into one relayout copy.
    x_cf = jnp.transpose(x.astype(jnp.float32), (1, 0, 2))       # (in_ch, bs, T)
    t_in_pad = t_out_pad + halo
    x_p = jnp.pad(x_cf, ((0, 0), (0, bs_pad - bs), (0, t_in_pad - T)))

    # trig table with signs folded in (see kernel docstring)
    w0 = q_para[:, :, 0, 0].astype(jnp.float32)
    w1 = q_para[:, :, 0, 1].astype(jnp.float32)
    trig = jnp.stack([-jnp.cos(w0), -jnp.sin(w0), jnp.cos(w1), -jnp.sin(w1)], axis=0)
    trig_flat = trig.reshape(-1)                                  # (4*out_ch*in_ch,)

    halo_per_tile = t_tile // halo

    def main_map(b, t):
        return (0, b, t)

    def halo_map(b, t):
        return (0, b, (t + 1) * halo_per_tile)   # block just past the main tile

    # Explicit VMEM budget: 2x double-buffered in/halo/out blocks plus a
    # generous allowance for the elementwise temporaries (xw, sin/cos, rolled
    # copies, cc/ss, accumulators), capped so v7x's 64 MiB VMEM is respected.
    blk_in = in_ch * bs_tile * t_tile * 4
    blk_halo = in_ch * bs_tile * halo * 4
    blk_out = out_ch * bs_tile * t_tile * 4
    blk_win = in_ch * bs_tile * (t_tile + halo) * 4
    vmem_limit = int(min(max(2 * (blk_in + blk_halo + blk_out) + 16 * blk_win,
                             24 * 1024 * 1024),
                         48 * 1024 * 1024))

    out_p = pl.pallas_call(
        _make_kernel(dilation, t_tile, halo, out_ch, in_ch),
        out_shape=jax.ShapeDtypeStruct((out_ch, bs_pad, t_out_pad), jnp.float32),
        grid=(nb, nt),
        in_specs=[
            pl.BlockSpec(memory_space=pltpu.MemorySpace.SMEM),    # trig scalars
            pl.BlockSpec((in_ch, bs_tile, t_tile), main_map),     # x main window
            pl.BlockSpec((in_ch, bs_tile, halo), halo_map),       # +dilation halo
        ],
        out_specs=pl.BlockSpec((out_ch, bs_tile, t_tile), main_map),
        compiler_params=pltpu.CompilerParams(
            dimension_semantics=("parallel", "parallel"),
            vmem_limit_bytes=vmem_limit),
    )(trig_flat, x_p, x_p)

    return jnp.transpose(out_p, (1, 0, 2))[:bs, :, :t_out]        # (bs, out_ch, t_out)


# -------------- reference: explicit 2-qubit statevector simulation --------------
def _circuit_ref(a, b, w0, w1):
    def ry(t):
        c, s = np.cos(t / 2.0), np.sin(t / 2.0)
        return np.array([[c, -s], [s, c]])
    H = np.array([[1.0, 1.0], [1.0, -1.0]]) / np.sqrt(2.0)
    CNOT = np.array([[1, 0, 0, 0], [0, 1, 0, 0], [0, 0, 0, 1], [0, 0, 1, 0]], dtype=np.float64)
    Z = np.diag([1.0, -1.0])
    I = np.eye(2)
    psi = np.zeros(4); psi[0] = 1.0
    psi = np.kron(H, H) @ psi
    psi = np.kron(ry(a), ry(b)) @ psi
    psi = CNOT @ psi
    psi = np.kron(ry(w0), ry(w1)) @ psi
    z0 = psi @ (np.kron(Z, I) @ psi)
    z1 = psi @ (np.kron(I, Z) @ psi)
    return z0 + z1


def _reference(x, q_para, dilation):
    x = np.asarray(x, np.float64)
    q = np.asarray(q_para, np.float64)
    bs, _, t = x.shape
    t_out = t - dilation
    out = np.zeros((bs, q.shape[0], t_out))
    for b in range(bs):
        for o in range(q.shape[0]):
            for i in range(t_out):
                s = 0.0
                for c in range(q.shape[1]):
                    s += _circuit_ref(x[b, c, i], x[b, c, i + dilation],
                                      q[o, c, 0, 0], q[o, c, 0, 1])
                out[b, o, i] = s
    return out


if __name__ == "__main__":
    key = jax.random.PRNGKey(0)
    kx, kw = jax.random.split(key)
    # 9 Qfilters (3 multichannel blocks x 3 channels), each q_para ~ randn((layers, wires))
    q_para = jax.random.normal(kw, (OUT_CH, IN_CH, CIRCUIT_LAYERS, WIRES), dtype=jnp.float32)

    # test 1: module-default small shape, dilation=1 (exercises the roll path)
    x1 = jax.random.normal(kx, (2, IN_CH, 16), dtype=jnp.float32)
    out1 = jax.block_until_ready(qconv1d(x1, q_para, dilation=1))
    ref1 = _reference(np.asarray(x1), np.asarray(q_para), 1)
    assert out1.shape == (2, OUT_CH, 15), out1.shape
    err1 = np.abs(np.asarray(out1) - ref1).max()
    assert np.allclose(np.asarray(out1), ref1, rtol=1e-4, atol=1e-4), f"max err = {err1}"

    # test 2: multi-tile grid (nb=2, nt=2) with ragged batch / time edges
    kx2, _ = jax.random.split(kx)
    x2 = jax.random.normal(kx2, (10, IN_CH, 140), dtype=jnp.float32)
    out2 = jax.block_until_ready(qconv1d(x2, q_para, dilation=1, bs_tile=8, t_tile=128))
    ref2 = _reference(np.asarray(x2), np.asarray(q_para), 1)
    assert out2.shape == (10, OUT_CH, 139), out2.shape
    err2 = np.abs(np.asarray(out2) - ref2).max()
    assert np.allclose(np.asarray(out2), ref2, rtol=1e-4, atol=1e-4), f"max err = {err2}"

    # test 3: lane-aligned dilation fast path (dilation % 128 == 0, no rolls)
    kx3, _ = jax.random.split(kx2)
    x3 = jax.random.normal(kx3, (2, IN_CH, 160), dtype=jnp.float32)
    out3 = jax.block_until_ready(qconv1d(x3, q_para, dilation=128))
    ref3 = _reference(np.asarray(x3), np.asarray(q_para), 128)
    assert out3.shape == (2, OUT_CH, 32), out3.shape
    err3 = np.abs(np.asarray(out3) - ref3).max()
    assert np.allclose(np.asarray(out3), ref3, rtol=1e-4, atol=1e-4), f"max err = {err3}"

    print("KERNEL_OK")
</pallas_src>

<mosaic_0001>
module attributes {stable_mosaic.version = 11 : i64} {
  func.func @kernel(%arg0: i32, %arg1: i32, %arg2: memref<36xf32, #tpu.memory_space<smem>>, %arg3: memref<3x8x128xf32, #tpu.memory_space<vmem>>, %arg4: memref<3x8x128xf32, #tpu.memory_space<vmem>>, %arg5: memref<3x8x128xf32, #tpu.memory_space<vmem>>) attributes {dimension_semantics = [#tpu.dimension_semantics<parallel>, #tpu.dimension_semantics<parallel>], iteration_bounds = array<i64: 1, 1>, scalar_prefetch = 0 : i64, scratch_operands = 0 : i64, tpu.core_type = #tpu.core_type<tc>, window_params = [{transform_indices = @transform_0, window_bounds = array<i64: 36>}, {transform_indices = @transform_1, window_bounds = array<i64: 3, 8, 128>}, {transform_indices = @transform_2, window_bounds = array<i64: 3, 8, 128>}, {transform_indices = @transform_3, window_bounds = array<i64: 3, 8, 128>}]} {
    %c0 = arith.constant 0 : index
    %c0_0 = arith.constant 0 : index
    %c0_1 = arith.constant 0 : index
    %0 = vector.load %arg3[%c0, %c0_0, %c0_1] : memref<3x8x128xf32, #tpu.memory_space<vmem>>, vector<3x8x128xf32>
    %c0_2 = arith.constant 0 : index
    %c0_3 = arith.constant 0 : index
    %c0_4 = arith.constant 0 : index
    %1 = vector.load %arg4[%c0_2, %c0_3, %c0_4] : memref<3x8x128xf32, #tpu.memory_space<vmem>>, vector<3x8x128xf32>
    %2 = tpu.concatenate %0, %1 in 2 : vector<3x8x128xf32>, vector<3x8x128xf32> -> vector<3x8x256xf32>
    %3 = math.sin %2 : vector<3x8x256xf32>
    %4 = math.cos %2 : vector<3x8x256xf32>
    %5 = vector.extract_strided_slice %3 {offsets = [0, 0, 0], sizes = [3, 8, 128], strides = [1, 1, 1]} : vector<3x8x256xf32> to vector<3x8x128xf32>
    %6 = vector.extract_strided_slice %4 {offsets = [0, 0, 0], sizes = [3, 8, 128], strides = [1, 1, 1]} : vector<3x8x256xf32> to vector<3x8x128xf32>
    %c255_i32 = arith.constant 255 : i32
    %7 = tpu.dynamic_rotate %3 by %c255_i32 dim 2 : vector<3x8x256xf32>, i32 -> vector<3x8x256xf32>
    %c255_i32_5 = arith.constant 255 : i32
    %8 = tpu.dynamic_rotate %4 by %c255_i32_5 dim 2 : vector<3x8x256xf32>, i32 -> vector<3x8x256xf32>
    %9 = vector.extract_strided_slice %7 {offsets = [0, 0, 0], sizes = [3, 8, 128], strides = [1, 1, 1]} : vector<3x8x256xf32> to vector<3x8x128xf32>
    %10 = vector.extract_strided_slice %8 {offsets = [0, 0, 0], sizes = [3, 8, 128], strides = [1, 1, 1]} : vector<3x8x256xf32> to vector<3x8x128xf32>
    %11 = arith.mulf %6, %10 : vector<3x8x128xf32>
    %12 = arith.mulf %5, %9 : vector<3x8x128xf32>
    %c0_6 = arith.constant 0 : index
    %13 = memref.load %arg2[%c0_6] : memref<36xf32, #tpu.memory_space<smem>>
    %14 = vector.extract_strided_slice %5 {offsets = [0, 0, 0], sizes = [1, 8, 128], strides = [1, 1, 1]} : vector<3x8x128xf32> to vector<1x8x128xf32>
    %15 = vector.shape_cast %14 : vector<1x8x128xf32> to vector<8x128xf32>
    %16 = vector.broadcast %13 : f32 to vector<8x128xf32>
    %17 = arith.mulf %16, %15 : vector<8x128xf32>
    %c9 = arith.constant 9 : index
    %18 = memref.load %arg2[%c9] : memref<36xf32, #tpu.memory_space<smem>>
    %19 = vector.extract_strided_slice %11 {offsets = [0, 0, 0], sizes = [1, 8, 128], strides = [1, 1, 1]} : vector<3x8x128xf32> to vector<1x8x128xf32>
    %20 = vector.shape_cast %19 : vector<1x8x128xf32> to vector<8x128xf32>
    %21 = vector.broadcast %18 : f32 to vector<8x128xf32>
    %22 = arith.mulf %21, %20 : vector<8x128xf32>
    %23 = arith.addf %17, %22 : vector<8x128xf32>
    %c18 = arith.constant 18 : index
    %24 = memref.load %arg2[%c18] : memref<36xf32, #tpu.memory_space<smem>>
    %25 = vector.extract_strided_slice %12 {offsets = [0, 0, 0], sizes = [1, 8, 128], strides = [1, 1, 1]} : vector<3x8x128xf32> to vector<1x8x128xf32>
    %26 = vector.shape_cast %25 : vector<1x8x128xf32> to vector<8x128xf32>
    %27 = vector.broadcast %24 : f32 to vector<8x128xf32>
    %28 = arith.mulf %27, %26 : vector<8x128xf32>
    %29 = arith.addf %23, %28 : vector<8x128xf32>
    %c27 = arith.constant 27 : index
    %30 = memref.load %arg2[%c27] : memref<36xf32, #tpu.memory_space<smem>>
    %31 = vector.extract_strided_slice %10 {offsets = [0, 0, 0], sizes = [1, 8, 128], strides = [1, 1, 1]} : vector<3x8x128xf32> to vector<1x8x128xf32>
    %32 = vector.shape_cast %31 : vector<1x8x128xf32> to vector<8x128xf32>
    %33 = vector.broadcast %30 : f32 to vector<8x128xf32>
    %34 = arith.mulf %33, %32 : vector<8x128xf32>
    %35 = arith.addf %29, %34 : vector<8x128xf32>
    %c1 = arith.constant 1 : index
    %36 = memref.load %arg2[%c1] : memref<36xf32, #tpu.memory_space<smem>>
    %37 = vector.extract_strided_slice %5 {offsets = [1, 0, 0], sizes = [1, 8, 128], strides = [1, 1, 1]} : vector<3x8x128xf32> to vector<1x8x128xf32>
    %38 = vector.shape_cast %37 : vector<1x8x128xf32> to vector<8x128xf32>
    %39 = vector.broadcast %36 : f32 to vector<8x128xf32>
    %40 = arith.mulf %39, %38 : vector<8x128xf32>
    %c10 = arith.constant 10 : index
    %41 = memref.load %arg2[%c10] : memref<36xf32, #tpu.memory_space<smem>>
    %42 = vector.extract_strided_slice %11 {offsets = [1, 0, 0], sizes = [1, 8, 128], strides = [1, 1, 1]} : vector<3x8x128xf32> to vector<1x8x128xf32>
    %43 = vector.shape_cast %42 : vector<1x8x128xf32> to vector<8x128xf32>
    %44 = vector.broadcast %41 : f32 to vector<8x128xf32>
    %45 = arith.mulf %44, %43 : vector<8x128xf32>
    %46 = arith.addf %40, %45 : vector<8x128xf32>
    %c19 = arith.constant 19 : index
    %47 = memref.load %arg2[%c19] : memref<36xf32, #tpu.memory_space<smem>>
    %48 = vector.extract_strided_slice %12 {offsets = [1, 0, 0], sizes = [1, 8, 128], strides = [1, 1, 1]} : vector<3x8x128xf32> to vector<1x8x128xf32>
    %49 = vector.shape_cast %48 : vector<1x8x128xf32> to vector<8x128xf32>
    %50 = vector.broadcast %47 : f32 to vector<8x128xf32>
    %51 = arith.mulf %50, %49 : vector<8x128xf32>
    %52 = arith.addf %46, %51 : vector<8x128xf32>
    %c28 = arith.constant 28 : index
    %53 = memref.load %arg2[%c28] : memref<36xf32, #tpu.memory_space<smem>>
    %54 = vector.extract_strided_slice %10 {offsets = [1, 0, 0], sizes = [1, 8, 128], strides = [1, 1, 1]} : vector<3x8x128xf32> to vector<1x8x128xf32>
    %55 = vector.shape_cast %54 : vector<1x8x128xf32> to vector<8x128xf32>
    %56 = vector.broadcast %53 : f32 to vector<8x128xf32>
    %57 = arith.mulf %56, %55 : vector<8x128xf32>
    %58 = arith.addf %52, %57 : vector<8x128xf32>
    %59 = arith.addf %35, %58 : vector<8x128xf32>
    %c2 = arith.constant 2 : index
    %60 = memref.load %arg2[%c2] : memref<36xf32, #tpu.memory_space<smem>>
    %61 = vector.extract_strided_slice %5 {offsets = [2, 0, 0], sizes = [1, 8, 128], strides = [1, 1, 1]} : vector<3x8x128xf32> to vector<1x8x128xf32>
    %62 = vector.shape_cast %61 : vector<1x8x128xf32> to vector<8x128xf32>
    %63 = vector.broadcast %60 : f32 to vector<8x128xf32>
    %64 = arith.mulf %63, %62 : vector<8x128xf32>
    %c11 = arith.constant 11 : index
    %65 = memref.load %arg2[%c11] : memref<36xf32, #tpu.memory_space<smem>>
    %66 = vector.extract_strided_slice %11 {offsets = [2, 0, 0], sizes = [1, 8, 128], strides = [1, 1, 1]} : vector<3x8x128xf32> to vector<1x8x128xf32>
    %67 = vector.shape_cast %66 : vector<1x8x128xf32> to vector<8x128xf32>
    %68 = vector.broadcast %65 : f32 to vector<8x128xf32>
    %69 = arith.mulf %68, %67 : vector<8x128xf32>
    %70 = arith.addf %64, %69 : vector<8x128xf32>
    %c20 = arith.constant 20 : index
    %71 = memref.load %arg2[%c20] : memref<36xf32, #tpu.memory_space<smem>>
    %72 = vector.extract_strided_slice %12 {offsets = [2, 0, 0], sizes = [1, 8, 128], strides = [1, 1, 1]} : vector<3x8x128xf32> to vector<1x8x128xf32>
    %73 = vector.shape_cast %72 : vector<1x8x128xf32> to vector<8x128xf32>
    %74 = vector.broadcast %71 : f32 to vector<8x128xf32>
    %75 = arith.mulf %74, %73 : vector<8x128xf32>
    %76 = arith.addf %70, %75 : vector<8x128xf32>
    %c29 = arith.constant 29 : index
    %77 = memref.load %arg2[%c29] : memref<36xf32, #tpu.memory_space<smem>>
    %78 = vector.extract_strided_slice %10 {offsets = [2, 0, 0], sizes = [1, 8, 128], strides = [1, 1, 1]} : vector<3x8x128xf32> to vector<1x8x128xf32>
    %79 = vector.shape_cast %78 : vector<1x8x128xf32> to vector<8x128xf32>
    %80 = vector.broadcast %77 : f32 to vector<8x128xf32>
    %81 = arith.mulf %80, %79 : vector<8x128xf32>
    %82 = arith.addf %76, %81 : vector<8x128xf32>
    %83 = arith.addf %59, %82 : vector<8x128xf32>
    %c0_7 = arith.constant 0 : index
    %c0_8 = arith.constant 0 : index
    %c0_9 = arith.constant 0 : index
    %84 = vector.load %arg5[%c0_7, %c0_8, %c0_9] : memref<3x8x128xf32, #tpu.memory_space<vmem>>, vector<1x8x128xf32>
    %85 = vector.shape_cast %84 : vector<1x8x128xf32> to vector<8x128xf32>
    %86 = vector.shape_cast %83 : vector<8x128xf32> to vector<1x8x128xf32>
    tpu.vector_store %arg5[%c0_7, %c0_8, %c0_9], %86 {strides = array<i32>} : memref<3x8x128xf32, #tpu.memory_space<vmem>>, vector<1x8x128xf32>,
    %c3 = arith.constant 3 : index
    %87 = memref.load %arg2[%c3] : memref<36xf32, #tpu.memory_space<smem>>
    %88 = vector.extract_strided_slice %5 {offsets = [0, 0, 0], sizes = [1, 8, 128], strides = [1, 1, 1]} : vector<3x8x128xf32> to vector<1x8x128xf32>
    %89 = vector.shape_cast %88 : vector<1x8x128xf32> to vector<8x128xf32>
    %90 = vector.broadcast %87 : f32 to vector<8x128xf32>
    %91 = arith.mulf %90, %89 : vector<8x128xf32>
    %c12 = arith.constant 12 : index
    %92 = memref.load %arg2[%c12] : memref<36xf32, #tpu.memory_space<smem>>
    %93 = vector.extract_strided_slice %11 {offsets = [0, 0, 0], sizes = [1, 8, 128], strides = [1, 1, 1]} : vector<3x8x128xf32> to vector<1x8x128xf32>
    %94 = vector.shape_cast %93 : vector<1x8x128xf32> to vector<8x128xf32>
    %95 = vector.broadcast %92 : f32 to vector<8x128xf32>
    %96 = arith.mulf %95, %94 : vector<8x128xf32>
    %97 = arith.addf %91, %96 : vector<8x128xf32>
    %c21 = arith.constant 21 : index
    %98 = memref.load %arg2[%c21] : memref<36xf32, #tpu.memory_space<smem>>
    %99 = vector.extract_strided_slice %12 {offsets = [0, 0, 0], sizes = [1, 8, 128], strides = [1, 1, 1]} : vector<3x8x128xf32> to vector<1x8x128xf32>
    %100 = vector.shape_cast %99 : vector<1x8x128xf32> to vector<8x128xf32>
    %101 = vector.broadcast %98 : f32 to vector<8x128xf32>
    %102 = arith.mulf %101, %100 : vector<8x128xf32>
    %103 = arith.addf %97, %102 : vector<8x128xf32>
    %c30 = arith.constant 30 : index
    %104 = memref.load %arg2[%c30] : memref<36xf32, #tpu.memory_space<smem>>
    %105 = vector.extract_strided_slice %10 {offsets = [0, 0, 0], sizes = [1, 8, 128], strides = [1, 1, 1]} : vector<3x8x128xf32> to vector<1x8x128xf32>
    %106 = vector.shape_cast %105 : vector<1x8x128xf32> to vector<8x128xf32>
    %107 = vector.broadcast %104 : f32 to vector<8x128xf32>
    %108 = arith.mulf %107, %106 : vector<8x128xf32>
    %109 = arith.addf %103, %108 : vector<8x128xf32>
    %c4 = arith.constant 4 : index
    %110 = memref.load %arg2[%c4] : memref<36xf32, #tpu.memory_space<smem>>
    %111 = vector.extract_strided_slice %5 {offsets = [1, 0, 0], sizes = [1, 8, 128], strides = [1, 1, 1]} : vector<3x8x128xf32> to vector<1x8x128xf32>
    %112 = vector.shape_cast %111 : vector<1x8x128xf32> to vector<8x128xf32>
    %113 = vector.broadcast %110 : f32 to vector<8x128xf32>
    %114 = arith.mulf %113, %112 : vector<8x128xf32>
    %c13 = arith.constant 13 : index
    %115 = memref.load %arg2[%c13] : memref<36xf32, #tpu.memory_space<smem>>
    %116 = vector.extract_strided_slice %11 {offsets = [1, 0, 0], sizes = [1, 8, 128], strides = [1, 1, 1]} : vector<3x8x128xf32> to vector<1x8x128xf32>
    %117 = vector.shape_cast %116 : vector<1x8x128xf32> to vector<8x128xf32>
    %118 = vector.broadcast %115 : f32 to vector<8x128xf32>
    %119 = arith.mulf %118, %117 : vector<8x128xf32>
    %120 = arith.addf %114, %119 : vector<8x128xf32>
    %c22 = arith.constant 22 : index
    %121 = memref.load %arg2[%c22] : memref<36xf32, #tpu.memory_space<smem>>
    %122 = vector.extract_strided_slice %12 {offsets = [1, 0, 0], sizes = [1, 8, 128], strides = [1, 1, 1]} : vector<3x8x128xf32> to vector<1x8x128xf32>
    %123 = vector.shape_cast %122 : vector<1x8x128xf32> to vector<8x128xf32>
    %124 = vector.broadcast %121 : f32 to vector<8x128xf32>
    %125 = arith.mulf %124, %123 : vector<8x128xf32>
    %126 = arith.addf %120, %125 : vector<8x128xf32>
    %c31 = arith.constant 31 : index
    %127 = memref.load %arg2[%c31] : memref<36xf32, #tpu.memory_space<smem>>
    %128 = vector.extract_strided_slice %10 {offsets = [1, 0, 0], sizes = [1, 8, 128], strides = [1, 1, 1]} : vector<3x8x128xf32> to vector<1x8x128xf32>
    %129 = vector.shape_cast %128 : vector<1x8x128xf32> to vector<8x128xf32>
    %130 = vector.broadcast %127 : f32 to vector<8x128xf32>
    %131 = arith.mulf %130, %129 : vector<8x128xf32>
    %132 = arith.addf %126, %131 : vector<8x128xf32>
    %133 = arith.addf %109, %132 : vector<8x128xf32>
    %c5 = arith.constant 5 : index
    %134 = memref.load %arg2[%c5] : memref<36xf32, #tpu.memory_space<smem>>
    %135 = vector.extract_strided_slice %5 {offsets = [2, 0, 0], sizes = [1, 8, 128], strides = [1, 1, 1]} : vector<3x8x128xf32> to vector<1x8x128xf32>
    %136 = vector.shape_cast %135 : vector<1x8x128xf32> to vector<8x128xf32>
    %137 = vector.broadcast %134 : f32 to vector<8x128xf32>
    %138 = arith.mulf %137, %136 : vector<8x128xf32>
    %c14 = arith.constant 14 : index
    %139 = memref.load %arg2[%c14] : memref<36xf32, #tpu.memory_space<smem>>
    %140 = vector.extract_strided_slice %11 {offsets = [2, 0, 0], sizes = [1, 8, 128], strides = [1, 1, 1]} : vector<3x8x128xf32> to vector<1x8x128xf32>
    %141 = vector.shape_cast %140 : vector<1x8x128xf32> to vector<8x128xf32>
    %142 = vector.broadcast %139 : f32 to vector<8x128xf32>
    %143 = arith.mulf %142, %141 : vector<8x128xf32>
    %144 = arith.addf %138, %143 : vector<8x128xf32>
    %c23 = arith.constant 23 : index
    %145 = memref.load %arg2[%c23] : memref<36xf32, #tpu.memory_space<smem>>
    %146 = vector.extract_strided_slice %12 {offsets = [2, 0, 0], sizes = [1, 8, 128], strides = [1, 1, 1]} : vector<3x8x128xf32> to vector<1x8x128xf32>
    %147 = vector.shape_cast %146 : vector<1x8x128xf32> to vector<8x128xf32>
    %148 = vector.broadcast %145 : f32 to vector<8x128xf32>
    %149 = arith.mulf %148, %147 : vector<8x128xf32>
    %150 = arith.addf %144, %149 : vector<8x128xf32>
    %c32 = arith.constant 32 : index
    %151 = memref.load %arg2[%c32] : memref<36xf32, #tpu.memory_space<smem>>
    %152 = vector.extract_strided_slice %10 {offsets = [2, 0, 0], sizes = [1, 8, 128], strides = [1, 1, 1]} : vector<3x8x128xf32> to vector<1x8x128xf32>
    %153 = vector.shape_cast %152 : vector<1x8x128xf32> to vector<8x128xf32>
    %154 = vector.broadcast %151 : f32 to vector<8x128xf32>
    %155 = arith.mulf %154, %153 : vector<8x128xf32>
    %156 = arith.addf %150, %155 : vector<8x128xf32>
    %157 = arith.addf %133, %156 : vector<8x128xf32>
    %c1_10 = arith.constant 1 : index
    %c0_11 = arith.constant 0 : index
    %c0_12 = arith.constant 0 : index
    %158 = vector.load %arg5[%c1_10, %c0_11, %c0_12] : memref<3x8x128xf32, #tpu.memory_space<vmem>>, vector<1x8x128xf32>
    %159 = vector.shape_cast %158 : vector<1x8x128xf32> to vector<8x128xf32>
    %160 = vector.shape_cast %157 : vector<8x128xf32> to vector<1x8x128xf32>
    tpu.vector_store %arg5[%c1_10, %c0_11, %c0_12], %160 {strides = array<i32>} : memref<3x8x128xf32, #tpu.memory_space<vmem>>, vector<1x8x128xf32>,
    %c6 = arith.constant 6 : index
    %161 = memref.load %arg2[%c6] : memref<36xf32, #tpu.memory_space<smem>>
    %162 = vector.extract_strided_slice %5 {offsets = [0, 0, 0], sizes = [1, 8, 128], strides = [1, 1, 1]} : vector<3x8x128xf32> to vector<1x8x128xf32>
    %163 = vector.shape_cast %162 : vector<1x8x128xf32> to vector<8x128xf32>
    %164 = vector.broadcast %161 : f32 to vector<8x128xf32>
    %165 = arith.mulf %164, %163 : vector<8x128xf32>
    %c15 = arith.constant 15 : index
    %166 = memref.load %arg2[%c15] : memref<36xf32, #tpu.memory_space<smem>>
    %167 = vector.extract_strided_slice %11 {offsets = [0, 0, 0], sizes = [1, 8, 128], strides = [1, 1, 1]} : vector<3x8x128xf32> to vector<1x8x128xf32>
    %168 = vector.shape_cast %167 : vector<1x8x128xf32> to vector<8x128xf32>
    %169 = vector.broadcast %166 : f32 to vector<8x128xf32>
    %170 = arith.mulf %169, %168 : vector<8x128xf32>
    %171 = arith.addf %165, %170 : vector<8x128xf32>
    %c24 = arith.constant 24 : index
    %172 = memref.load %arg2[%c24] : memref<36xf32, #tpu.memory_space<smem>>
    %173 = vector.extract_strided_slice %12 {offsets = [0, 0, 0], sizes = [1, 8, 128], strides = [1, 1, 1]} : vector<3x8x128xf32> to vector<1x8x128xf32>
    %174 = vector.shape_cast %173 : vector<1x8x128xf32> to vector<8x128xf32>
    %175 = vector.broadcast %172 : f32 to vector<8x128xf32>
    %176 = arith.mulf %175, %174 : vector<8x128xf32>
    %177 = arith.addf %171, %176 : vector<8x128xf32>
    %c33 = arith.constant 33 : index
    %178 = memref.load %arg2[%c33] : memref<36xf32, #tpu.memory_space<smem>>
    %179 = vector.extract_strided_slice %10 {offsets = [0, 0, 0], sizes = [1, 8, 128], strides = [1, 1, 1]} : vector<3x8x128xf32> to vector<1x8x128xf32>
    %180 = vector.shape_cast %179 : vector<1x8x128xf32> to vector<8x128xf32>
    %181 = vector.broadcast %178 : f32 to vector<8x128xf32>
    %182 = arith.mulf %181, %180 : vector<8x128xf32>
    %183 = arith.addf %177, %182 : vector<8x128xf32>
    %c7 = arith.constant 7 : index
    %184 = memref.load %arg2[%c7] : memref<36xf32, #tpu.memory_space<smem>>
    %185 = vector.extract_strided_slice %5 {offsets = [1, 0, 0], sizes = [1, 8, 128], strides = [1, 1, 1]} : vector<3x8x128xf32> to vector<1x8x128xf32>
    %186 = vector.shape_cast %185 : vector<1x8x128xf32> to vector<8x128xf32>
    %187 = vector.broadcast %184 : f32 to vector<8x128xf32>
    %188 = arith.mulf %187, %186 : vector<8x128xf32>
    %c16 = arith.constant 16 : index
    %189 = memref.load %arg2[%c16] : memref<36xf32, #tpu.memory_space<smem>>
    %190 = vector.extract_strided_slice %11 {offsets = [1, 0, 0], sizes = [1, 8, 128], strides = [1, 1, 1]} : vector<3x8x128xf32> to vector<1x8x128xf32>
    %191 = vector.shape_cast %190 : vector<1x8x128xf32> to vector<8x128xf32>
    %192 = vector.broadcast %189 : f32 to vector<8x128xf32>
    %193 = arith.mulf %192, %191 : vector<8x128xf32>
    %194 = arith.addf %188, %193 : vector<8x128xf32>
    %c25 = arith.constant 25 : index
    %195 = memref.load %arg2[%c25] : memref<36xf32, #tpu.memory_space<smem>>
    %196 = vector.extract_strided_slice %12 {offsets = [1, 0, 0], sizes = [1, 8, 128], strides = [1, 1, 1]} : vector<3x8x128xf32> to vector<1x8x128xf32>
    %197 = vector.shape_cast %196 : vector<1x8x128xf32> to vector<8x128xf32>
    %198 = vector.broadcast %195 : f32 to vector<8x128xf32>
    %199 = arith.mulf %198, %197 : vector<8x128xf32>
    %200 = arith.addf %194, %199 : vector<8x128xf32>
    %c34 = arith.constant 34 : index
    %201 = memref.load %arg2[%c34] : memref<36xf32, #tpu.memory_space<smem>>
    %202 = vector.extract_strided_slice %10 {offsets = [1, 0, 0], sizes = [1, 8, 128], strides = [1, 1, 1]} : vector<3x8x128xf32> to vector<1x8x128xf32>
    %203 = vector.shape_cast %202 : vector<1x8x128xf32> to vector<8x128xf32>
    %204 = vector.broadcast %201 : f32 to vector<8x128xf32>
    %205 = arith.mulf %204, %203 : vector<8x128xf32>
    %206 = arith.addf %200, %205 : vector<8x128xf32>
    %207 = arith.addf %183, %206 : vector<8x128xf32>
    %c8 = arith.constant 8 : index
    %208 = memref.load %arg2[%c8] : memref<36xf32, #tpu.memory_space<smem>>
    %209 = vector.extract_strided_slice %5 {offsets = [2, 0, 0], sizes = [1, 8, 128], strides = [1, 1, 1]} : vector<3x8x128xf32> to vector<1x8x128xf32>
    %210 = vector.shape_cast %209 : vector<1x8x128xf32> to vector<8x128xf32>
    %211 = vector.broadcast %208 : f32 to vector<8x128xf32>
    %212 = arith.mulf %211, %210 : vector<8x128xf32>
    %c17 = arith.constant 17 : index
    %213 = memref.load %arg2[%c17] : memref<36xf32, #tpu.memory_space<smem>>
    %214 = vector.extract_strided_slice %11 {offsets = [2, 0, 0], sizes = [1, 8, 128], strides = [1, 1, 1]} : vector<3x8x128xf32> to vector<1x8x128xf32>
    %215 = vector.shape_cast %214 : vector<1x8x128xf32> to vector<8x128xf32>
    %216 = vector.broadcast %213 : f32 to vector<8x128xf32>
    %217 = arith.mulf %216, %215 : vector<8x128xf32>
    %218 = arith.addf %212, %217 : vector<8x128xf32>
    %c26 = arith.constant 26 : index
    %219 = memref.load %arg2[%c26] : memref<36xf32, #tpu.memory_space<smem>>
    %220 = vector.extract_strided_slice %12 {offsets = [2, 0, 0], sizes = [1, 8, 128], strides = [1, 1, 1]} : vector<3x8x128xf32> to vector<1x8x128xf32>
    %221 = vector.shape_cast %220 : vector<1x8x128xf32> to vector<8x128xf32>
    %222 = vector.broadcast %219 : f32 to vector<8x128xf32>
    %223 = arith.mulf %222, %221 : vector<8x128xf32>
    %224 = arith.addf %218, %223 : vector<8x128xf32>
    %c35 = arith.constant 35 : index
    %225 = memref.load %arg2[%c35] : memref<36xf32, #tpu.memory_space<smem>>
    %226 = vector.extract_strided_slice %10 {offsets = [2, 0, 0], sizes = [1, 8, 128], strides = [1, 1, 1]} : vector<3x8x128xf32> to vector<1x8x128xf32>
    %227 = vector.shape_cast %226 : vector<1x8x128xf32> to vector<8x128xf32>
    %228 = vector.broadcast %225 : f32 to vector<8x128xf32>
    %229 = arith.mulf %228, %227 : vector<8x128xf32>
    %230 = arith.addf %224, %229 : vector<8x128xf32>
    %231 = arith.addf %207, %230 : vector<8x128xf32>
    %c2_13 = arith.constant 2 : index
    %c0_14 = arith.constant 0 : index
    %c0_15 = arith.constant 0 : index
    %232 = vector.load %arg5[%c2_13, %c0_14, %c0_15] : memref<3x8x128xf32, #tpu.memory_space<vmem>>, vector<1x8x128xf32>
    %233 = vector.shape_cast %232 : vector<1x8x128xf32> to vector<8x128xf32>
    %234 = vector.shape_cast %231 : vector<8x128xf32> to vector<1x8x128xf32>
    tpu.vector_store %arg5[%c2_13, %c0_14, %c0_15], %234 {strides = array<i32>} : memref<3x8x128xf32, #tpu.memory_space<vmem>>, vector<1x8x128xf32>,
    return
  }
  func.func @transform_0(%arg0: i32, %arg1: i32) -> i32 {
    %c0_i32 = arith.constant 0 : i32
    %c0_i32_0 = arith.constant 0 : i32
    return %c0_i32 : i32
  }
  func.func @transform_1(%arg0: i32, %arg1: i32) -> (i32, i32, i32) {
    %c0_i32 = arith.constant 0 : i32
    %c0_i32_0 = arith.constant 0 : i32
    return %c0_i32, %arg0, %arg1 : i32, i32, i32
  }
  func.func @transform_2(%arg0: i32, %arg1: i32) -> (i32, i32, i32) {
    %c1_i32 = arith.constant 1 : i32
    %0 = arith.addi %arg1, %c1_i32 : i32
    %c1_i32_0 = arith.constant 1 : i32
    %1 = arith.muli %0, %c1_i32_0 : i32
    %c0_i32 = arith.constant 0 : i32
    %c0_i32_1 = arith.constant 0 : i32
    return %c0_i32, %arg0, %1 : i32, i32, i32
  }
  func.func @transform_3(%arg0: i32, %arg1: i32) -> (i32, i32, i32) {
    %c0_i32 = arith.constant 0 : i32
    %c0_i32_0 = arith.constant 0 : i32
    return %c0_i32, %arg0, %arg1 : i32, i32, i32
  }
}

</mosaic_0001>

<llo_original>
// kernel: tpu_custom_call.1
$region0: #{tpu_custom_call.1}
  #allocation0 [shape = 'u32[]', space=smem, size = 0x4, offset = 0x4, fixed_abs, tag = 'smem constant byte address 0x4 - core index']
  #allocation1 [shape = 'u32[144,128]{1,0:T(1,128)}', space=vmem, size = 0x12000, scoped, tag = 'internal scratch']
  %s0 = inlined_call_operand.hbm [shape: f32[36], index: 0, kind: input, shape index: {}]
  %s1 = inlined_call_operand.hbm [shape: f32[3,8,256], index: 1, kind: input, shape index: {}]
  %s2 = inlined_call_operand.hbm [shape: f32[3,8,256], index: 2, kind: input, shape index: {}]
  %s3 = inlined_call_operand.hbm [shape: f32[3,8,128], index: 3, kind: output, shape index: {}]
  %s4 = sld [smem:[#allocation0]]
  $region34: #{tpu_custom_call.1} parent=0
    _
  %s6 = ssub.s32 1, %s4
  %s7 = scalar_select 0, %s6, %s4
  $region1: #{tpu_custom_call.1} parent=0
    #allocation2 [shape = 'u8[512]{0}', space=smem, size = 0x200, scoped, tag = 'input window, operand 0, single buffered']
    #allocation3 [shape = 's32[1]{0}', space=sflag, size = 0x4, scoped, tag = 'scoped memory for tpu_custom_call.1']
    #allocation4 [shape = 's32[1]{0}', space=sflag, size = 0x4, scoped, tag = 'scoped memory for tpu_custom_call.1']
    #allocation5 [shape = 's32[1]{0}', space=sflag, size = 0x4, scoped, tag = 'scoped memory for tpu_custom_call.1']
    #allocation6 [shape = 'u8[12288]{0}', space=vmem, size = 0x3000, scoped, tag = 'input window, operand 1, single buffered']
    #allocation7 [shape = 'u8[12288]{0}', space=vmem, size = 0x3000, scoped, tag = 'input window, operand 2, single buffered']
    #allocation8 [shape = 's32[1]{0}', space=sflag, size = 0x4, scoped, tag = 'scoped memory for tpu_custom_call.1']
    #allocation9 [shape = 'u8[12288]{0}', space=vmem, size = 0x3000, scoped, tag = 'output window, operand 0, single buffered']
    %8 = vsyncpa [#allocation5], 0
    %9 = vsyncpa [#allocation3], 0
    %10 = vsyncpa [#allocation8], 0
    %11 = vsyncpa [#allocation4], 0
    // Predicated region
    $region2: #{tpu_custom_call.1} parent=1 // pred_check
      _
    $region3: #{tpu_custom_call.1} parent=1 // pred_check_branch
      %13 = sbr.rel (0) target = $region5
    $region4: #{tpu_custom_call.1} parent=1 // pred_region
      %s15 = ssub.s32 16, 16
      %16 = vsyncadd [#allocation5], %s15
      %19 = dma.hbm_to_smem %s0, 16, [#allocation2], [#allocation5]
    $region5: #{tpu_custom_call.1} parent=1 // pred_fallthru
      _
    // Predicated region
    $region6: #{tpu_custom_call.1} parent=1 // pred_check
      _
    $region7: #{tpu_custom_call.1} parent=1 // pred_check_branch
      %21 = sbr.rel (0) target = $region9
    $region8: #{tpu_custom_call.1} parent=1 // pred_region
      %s23 = ssub.s32 384, 384
      %24 = vsyncadd [#allocation3], %s23
      %s25 = sshll.u32 [#allocation6], 4
      %s26 = int_to_ptr.vmem [resolvable:$true] %s25
      %31 = dma.hbm_to_vmem [thread:$0]  %s1, 384, %s26, [#allocation3], 256, 128, 8
    $region9: #{tpu_custom_call.1} parent=1 // pred_fallthru
      _
    // Predicated region
    $region10: #{tpu_custom_call.1} parent=1 // pred_check
      _
    $region11: #{tpu_custom_call.1} parent=1 // pred_check_branch
      %33 = sbr.rel (0) target = $region13
    $region12: #{tpu_custom_call.1} parent=1 // pred_region
      %s34 = sadd.s32 0, 1
      %s36 = ssub.s32 384, 384
      %37 = vsyncadd [#allocation8], %s36
      %s38 = smul.addr %s34, 128
      %s39 = scalar_lea.hbm %s2, %s38
      %s40 = sshll.u32 [#allocation7], 4
      %s41 = int_to_ptr.vmem [resolvable:$true] %s40
      %46 = dma.hbm_to_vmem [thread:$0]  %s39, 384, %s41, [#allocation8], 256, 128, 8
    $region13: #{tpu_custom_call.1} parent=1 // pred_fallthru
      _
    // Predicated region
    $region14: #{tpu_custom_call.1} parent=1 // pred_check
      _
    $region15: #{tpu_custom_call.1} parent=1 // pred_check_branch
      %48 = sbr.rel (0) target = $region17
    $region16: #{tpu_custom_call.1} parent=1 // pred_region
      %49 = dma.done [#allocation5], 16
    $region17: #{tpu_custom_call.1} parent=1 // pred_fallthru
      _
    // Predicated region
    $region18: #{tpu_custom_call.1} parent=1 // pred_check
      _
    $region19: #{tpu_custom_call.1} parent=1 // pred_check_branch
      %51 = sbr.rel (0) target = $region21
    $region20: #{tpu_custom_call.1} parent=1 // pred_region
      %52 = dma.done [#allocation3], 384
    $region21: #{tpu_custom_call.1} parent=1 // pred_fallthru
      _
    // Predicated region
    $region22: #{tpu_custom_call.1} parent=1 // pred_check
      _
    $region23: #{tpu_custom_call.1} parent=1 // pred_check_branch
      %54 = sbr.rel (0) target = $region25
    $region24: #{tpu_custom_call.1} parent=1 // pred_region
      %55 = dma.done [#allocation8], 384
    $region25: #{tpu_custom_call.1} parent=1 // pred_fallthru
      _
    %56 = sfence
    %s57 = sadd.s32 0, 1
    %v58 = vld [vmem:[#allocation6] sm:$0xff]
    %v59 = vld [vmem:[#allocation6 + $0x8] sm:$0xff]
    %v60 = vld [vmem:[#allocation6 + $0x10] sm:$0xff]
    %v61 = vld [vmem:[#allocation7] sm:$0xff]
    %v62 = vld [vmem:[#allocation7 + $0x8] sm:$0xff]
    %v63 = vld [vmem:[#allocation7 + $0x10] sm:$0xff]
    %v64 = vand.u32 2147483647, %v58
    %vm65 = vcmp.le.f32.partialorder %v64, 0.7853982
    %vm66 = vcmp.lt.s32.totalorder %v58, 0
    %v67 = vand.u32 %v58, 2139095040
    %v68 = vshrl.u32 %v67, 23
    %v69 = vsub.s32 %v68, 127
    %v70 = vand.u32 2147483647, %v58
    %v71 = vand.u32 %v70, 8388607
    %v72 = vor.u32 %v71, 8388608
    %v73 = vsub.s32 0, %v72
    %v74 = vadd.s32 %v69, 1
    %vm75 = vcmp.gt.s32.totalorder %v74, 0
    %v76 = vsel %vm75, %v74, 0
    %v77 = vshrl.u32 %v76, 5
    %v78 = vand.u32 %v76, 31
    %v79 = vsub.s32 32, %v78
    %v80 = vshrl.u32 683565275, %v79
    %v81 = vshll.u32 683565275, %v78
    %v82 = vshrl.u32 2475754826, %v79
    %v83 = vor.u32 %v81, %v82
    %v84 = vshll.u32 2475754826, %v78
    %v85 = vshrl.u32 2131351028, %v79
    %v86 = vor.u32 %v84, %v85
    %v87 = vshll.u32 2131351028, %v78
    %v88 = vshrl.u32 2102212464, %v79
    %v89 = vor.u32 %v87, %v88
    %v90 = vshll.u32 2102212464, %v78
    %v91 = vshrl.u32 920167782, %v79
    %v92 = vor.u32 %v90, %v91
    %v93 = vshll.u32 920167782, %v78
    %v94 = vshrl.u32 1326507024, %v79
    %v95 = vor.u32 %v93, %v94
    %vm96 = vcmp.lt.s32.totalorder %v77, 1
    %vm97 = vcmp.lt.s32.totalorder %v77, 2
    %vm98 = vcmp.lt.s32.totalorder %v77, 3
    %vm99 = vcmp.lt.s32.totalorder %v77, 4
    %v100 = vsel %vm96, %v80, %v83
    %v101 = vsel %vm99, %v89, 2102212464
    %v102 = vsel %vm98, %v86, %v101
    %v103 = vsel %vm97, %v100, %v102
    %v104 = vsel %vm96, %v83, %v86
    %v105 = vsel %vm99, %v92, 920167782
    %v106 = vsel %vm98, %v89, %v105
    %v107 = vsel %vm97, %v104, %v106
    %v108 = vsel %vm96, %v86, %v89
    %v109 = vsel %vm99, %v95, 1326507024
    %v110 = vsel %vm98, %v92, %v109
    %v111 = vsel %vm97, %v108, %v110
    %v112 = vshll.u32 %v72, 8
    %v113 = vmul.u32.u64.compose %v112, %v111
    %v114 = vextract.low.u32 %v113
    %v115 = vextract.high.u32 %v113
    %v116 = vmul.u32.u64.compose %v112, %v107
    %v117 = vextract.low.u32 %v116
    %v118 = vextract.high.u32 %v116
    %v119 = vmul.u32 %v112, %v103
    %v120 = vadd.s32 %v115, %v117
    %vm121 = vc.u32 %v115, %v117
    %v122 = vadd.s32 %v118, 1
    %v123 = vsel %vm121, %v122, %v118
    %v124 = vadd.s32 %v119, %v123
    %v125 = vadd.s32 %v124, 536870912
    %v126 = vshrl.u32 %v125, 30
    %v127 = vshll.u32 %v126, 30
    %v128 = vsub.s32 %v124, %v127
    %vm129 = vcmp.lt.s32.totalorder %v128, 0
    %v130 = vsub.s32 0, %v128
    %v131 = vsel %vm129, %v130, %v128
    %v132 = vclz %v131
    %v133 = vsub.s32 %v132, 2
    %vm134 = vcmp.gt.s32.totalorder 0, %v133
    %v135 = vsel %vm134, 0, %v133
    %v136 = vsub.s32 32, %v135
    %v137 = vshll.u32 %v128, %v135
    %v138 = vshrl.u32 %v120, %v136
    %v139 = vor.u32 %v137, %v138
    %v140 = vsub.s32 4294967266, %v135
    %v141 = vadd.s32 %v140, 127
    %v142 = vshll.u32 %v141, 23
    %v143 = vor.u32 4788187, %v142
    %v144 = vand.u32 2147483647, %v143
    %v146 = vcvt.s32.f32 %v139
    %v147 = vmul.f32 %v146, %v144
    %v148 = vxor.u32 %v147, 2147483648
    %v149 = vsel %vm66, %v148, %v147
    %v150 = vsub.s32 4, %v126
    %v151 = vsel %vm66, %v150, %v126
    %v152 = vsel %vm65, %v58, %v149
    %v153 = vsel %vm65, 0, %v151
    %v154 = vcosq.f32.pop %v152
    %v155 = vsinq.f32.pop %v152
    %vm156 = vweird.f32 %v58
    %v157 = vadd.s32 %v153, 3
    %v158 = vand.u32 %v157, 3
    %vm159 = vcmp.lt.s32.totalorder %v158, 2
    %vm160 = vcmp.eq.s32.totalorder %v158, 0
    %v161 = vxor.u32 %v155, 2147483648
    %v162 = vsel %vm160, %v154, %v161
    %vm163 = vcmp.eq.s32.totalorder %v158, 2
    %v164 = vxor.u32 %v154, 2147483648
    %v165 = vsel %vm163, %v164, %v155
    %v166 = vsel %vm159, %v162, %v165
    %v167 = vsel %vm156, nan, %v166
    %v168 = vand.u32 2147483647, %v61
    %vm169 = vcmp.le.f32.partialorder %v168, 0.7853982
    %vm170 = vcmp.lt.s32.totalorder %v61, 0
    %v171 = vand.u32 %v61, 2139095040
    %v172 = vshrl.u32 %v171, 23
    %v173 = vsub.s32 %v172, 127
    %v174 = vand.u32 2147483647, %v61
    %v175 = vand.u32 %v174, 8388607
    %v176 = vor.u32 %v175, 8388608
    %v177 = vsub.s32 0, %v176
    %v178 = vadd.s32 %v173, 1
    %vm179 = vcmp.gt.s32.totalorder %v178, 0
    %v180 = vsel %vm179, %v178, 0
    %v181 = vshrl.u32 %v180, 5
    %v182 = vand.u32 %v180, 31
    %v183 = vsub.s32 32, %v182
    %v184 = vshrl.u32 683565275, %v183
    %v185 = vshll.u32 683565275, %v182
    %v186 = vshrl.u32 2475754826, %v183
    %v187 = vor.u32 %v185, %v186
    %v188 = vshll.u32 2475754826, %v182
    %v189 = vshrl.u32 2131351028, %v183
    %v190 = vor.u32 %v188, %v189
    %v191 = vshll.u32 2131351028, %v182
    %v192 = vshrl.u32 2102212464, %v183
    %v193 = vor.u32 %v191, %v192
    %v194 = vshll.u32 2102212464, %v182
    %v195 = vshrl.u32 920167782, %v183
    %v196 = vor.u32 %v194, %v195
    %v197 = vshll.u32 920167782, %v182
    %v198 = vshrl.u32 1326507024, %v183
    %v199 = vor.u32 %v197, %v198
    %vm200 = vcmp.lt.s32.totalorder %v181, 1
    %vm201 = vcmp.lt.s32.totalorder %v181, 2
    %vm202 = vcmp.lt.s32.totalorder %v181, 3
    %vm203 = vcmp.lt.s32.totalorder %v181, 4
    %v204 = vsel %vm200, %v184, %v187
    %v205 = vsel %vm203, %v193, 2102212464
    %v206 = vsel %vm202, %v190, %v205
    %v207 = vsel %vm201, %v204, %v206
    %v208 = vsel %vm200, %v187, %v190
    %v209 = vsel %vm203, %v196, 920167782
    %v210 = vsel %vm202, %v193, %v209
    %v211 = vsel %vm201, %v208, %v210
    %v212 = vsel %vm200, %v190, %v193
    %v213 = vsel %vm203, %v199, 1326507024
    %v214 = vsel %vm202, %v196, %v213
    %v215 = vsel %vm201, %v212, %v214
    %v216 = vshll.u32 %v176, 8
    %v217 = vmul.u32.u64.compose %v216, %v215
    %v218 = vextract.low.u32 %v217
    %v219 = vextract.high.u32 %v217
    %v220 = vmul.u32.u64.compose %v216, %v211
    %v221 = vextract.low.u32 %v220
    %v222 = vextract.high.u32 %v220
    %v223 = vmul.u32 %v216, %v207
    %v224 = vadd.s32 %v219, %v221
    %vm225 = vc.u32 %v219, %v221
    %v226 = vadd.s32 %v222, 1
    %v227 = vsel %vm225, %v226, %v222
    %v228 = vadd.s32 %v223, %v227
    %v229 = vadd.s32 %v228, 536870912
    %v230 = vshrl.u32 %v229, 30
    %v231 = vshll.u32 %v230, 30
    %v232 = vsub.s32 %v228, %v231
    %vm233 = vcmp.lt.s32.totalorder %v232, 0
    %v234 = vsub.s32 0, %v232
    %v235 = vsel %vm233, %v234, %v232
    %v236 = vclz %v235
    %v237 = vsub.s32 %v236, 2
    %vm238 = vcmp.gt.s32.totalorder 0, %v237
    %v239 = vsel %vm238, 0, %v237
    %v240 = vsub.s32 32, %v239
    %v241 = vshll.u32 %v232, %v239
    %v242 = vshrl.u32 %v224, %v240
    %v243 = vor.u32 %v241, %v242
    %v244 = vsub.s32 4294967266, %v239
    %v245 = vadd.s32 %v244, 127
    %v246 = vshll.u32 %v245, 23
    %v247 = vor.u32 4788187, %v246
    %v248 = vand.u32 2147483647, %v247
    %v250 = vcvt.s32.f32 %v243
    %v251 = vmul.f32 %v250, %v248
    %v252 = vxor.u32 %v251, 2147483648
    %v253 = vsel %vm170, %v252, %v251
    %v254 = vsub.s32 4, %v230
    %v255 = vsel %vm170, %v254, %v230
    %v256 = vsel %vm169, %v61, %v253
    %v257 = vsel %vm169, 0, %v255
    %v258 = vcosq.f32.pop %v256
    %v259 = vsinq.f32.pop %v256
    %vm260 = vweird.f32 %v61
    %v261 = vadd.s32 %v257, 3
    %v262 = vand.u32 %v261, 3
    %vm263 = vcmp.lt.s32.totalorder %v262, 2
    %vm264 = vcmp.eq.s32.totalorder %v262, 0
    %v265 = vxor.u32 %v259, 2147483648
    %v266 = vsel %vm264, %v258, %v265
    %vm267 = vcmp.eq.s32.totalorder %v262, 2
    %v268 = vxor.u32 %v258, 2147483648
    %v269 = vsel %vm267, %v268, %v259
    %v270 = vsel %vm263, %v266, %v269
    %v271 = vsel %vm260, nan, %v270
    %v272 = vand.u32 2147483647, %v59
    %vm273 = vcmp.le.f32.partialorder %v272, 0.7853982
    %vm274 = vcmp.lt.s32.totalorder %v59, 0
    %v275 = vand.u32 %v59, 2139095040
    %v276 = vshrl.u32 %v275, 23
    %v277 = vsub.s32 %v276, 127
    %v278 = vand.u32 2147483647, %v59
    %v279 = vand.u32 %v278, 8388607
    %v280 = vor.u32 %v279, 8388608
    %v281 = vsub.s32 0, %v280
    %v282 = vadd.s32 %v277, 1
    %vm283 = vcmp.gt.s32.totalorder %v282, 0
    %v284 = vsel %vm283, %v282, 0
    %v285 = vshrl.u32 %v284, 5
    %v286 = vand.u32 %v284, 31
    %v287 = vsub.s32 32, %v286
    %v288 = vshrl.u32 683565275, %v287
    %v289 = vshll.u32 683565275, %v286
    %v290 = vshrl.u32 2475754826, %v287
    %v291 = vor.u32 %v289, %v290
    %v292 = vshll.u32 2475754826, %v286
    %v293 = vshrl.u32 2131351028, %v287
    %v294 = vor.u32 %v292, %v293
    %v295 = vshll.u32 2131351028, %v286
    %v296 = vshrl.u32 2102212464, %v287
    %v297 = vor.u32 %v295, %v296
    %v298 = vshll.u32 2102212464, %v286
    %v299 = vshrl.u32 920167782, %v287
    %v300 = vor.u32 %v298, %v299
    %v301 = vshll.u32 920167782, %v286
    %v302 = vshrl.u32 1326507024, %v287
    %v303 = vor.u32 %v301, %v302
    %vm304 = vcmp.lt.s32.totalorder %v285, 1
    %vm305 = vcmp.lt.s32.totalorder %v285, 2
    %vm306 = vcmp.lt.s32.totalorder %v285, 3
    %vm307 = vcmp.lt.s32.totalorder %v285, 4
    %v308 = vsel %vm304, %v288, %v291
    %v309 = vsel %vm307, %v297, 2102212464
    %v310 = vsel %vm306, %v294, %v309
    %v311 = vsel %vm305, %v308, %v310
    %v312 = vsel %vm304, %v291, %v294
    %v313 = vsel %vm307, %v300, 920167782
    %v314 = vsel %vm306, %v297, %v313
    %v315 = vsel %vm305, %v312, %v314
    %v316 = vsel %vm304, %v294, %v297
    %v317 = vsel %vm307, %v303, 1326507024
    %v318 = vsel %vm306, %v300, %v317
    %v319 = vsel %vm305, %v316, %v318
    %v320 = vshll.u32 %v280, 8
    %v321 = vmul.u32.u64.compose %v320, %v319
    %v322 = vextract.low.u32 %v321
    %v323 = vextract.high.u32 %v321
    %v324 = vmul.u32.u64.compose %v320, %v315
    %v325 = vextract.low.u32 %v324
    %v326 = vextract.high.u32 %v324
    %v327 = vmul.u32 %v320, %v311
    %v328 = vadd.s32 %v323, %v325
    %vm329 = vc.u32 %v323, %v325
    %v330 = vadd.s32 %v326, 1
    %v331 = vsel %vm329, %v330, %v326
    %v332 = vadd.s32 %v327, %v331
    %v333 = vadd.s32 %v332, 536870912
    %v334 = vshrl.u32 %v333, 30
    %v335 = vshll.u32 %v334, 30
    %v336 = vsub.s32 %v332, %v335
    %vm337 = vcmp.lt.s32.totalorder %v336, 0
    %v338 = vsub.s32 0, %v336
    %v339 = vsel %vm337, %v338, %v336
    %v340 = vclz %v339
    %v341 = vsub.s32 %v340, 2
    %vm342 = vcmp.gt.s32.totalorder 0, %v341
    %v343 = vsel %vm342, 0, %v341
    %v344 = vsub.s32 32, %v343
    %v345 = vshll.u32 %v336, %v343
    %v346 = vshrl.u32 %v328, %v344
    %v347 = vor.u32 %v345, %v346
    %v348 = vsub.s32 4294967266, %v343
    %v349 = vadd.s32 %v348, 127
    %v350 = vshll.u32 %v349, 23
    %v351 = vor.u32 4788187, %v350
    %v352 = vand.u32 2147483647, %v351
    %v354 = vcvt.s32.f32 %v347
    %v355 = vmul.f32 %v354, %v352
    %v356 = vxor.u32 %v355, 2147483648
    %v357 = vsel %vm274, %v356, %v355
    %v358 = vsub.s32 4, %v334
    %v359 = vsel %vm274, %v358, %v334
    %v360 = vsel %vm273, %v59, %v357
    %v361 = vsel %vm273, 0, %v359
    %v362 = vcosq.f32.pop %v360
    %v363 = vsinq.f32.pop %v360
    %vm364 = vweird.f32 %v59
    %v365 = vadd.s32 %v361, 3
    %v366 = vand.u32 %v365, 3
    %vm367 = vcmp.lt.s32.totalorder %v366, 2
    %vm368 = vcmp.eq.s32.totalorder %v366, 0
    %v369 = vxor.u32 %v363, 2147483648
    %v370 = vsel %vm368, %v362, %v369
    %vm371 = vcmp.eq.s32.totalorder %v366, 2
    %v372 = vxor.u32 %v362, 2147483648
    %v373 = vsel %vm371, %v372, %v363
    %v374 = vsel %vm367, %v370, %v373
    %v375 = vsel %vm364, nan, %v374
    %v376 = vand.u32 2147483647, %v62
    %vm377 = vcmp.le.f32.partialorder %v376, 0.7853982
    %vm378 = vcmp.lt.s32.totalorder %v62, 0
    %v379 = vand.u32 %v62, 2139095040
    %v380 = vshrl.u32 %v379, 23
    %v381 = vsub.s32 %v380, 127
    %v382 = vand.u32 2147483647, %v62
    %v383 = vand.u32 %v382, 8388607
    %v384 = vor.u32 %v383, 8388608
    %v385 = vsub.s32 0, %v384
    %v386 = vadd.s32 %v381, 1
    %vm387 = vcmp.gt.s32.totalorder %v386, 0
    %v388 = vsel %vm387, %v386, 0
    %v389 = vshrl.u32 %v388, 5
    %v390 = vand.u32 %v388, 31
    %v391 = vsub.s32 32, %v390
    %v392 = vshrl.u32 683565275, %v391
    %v393 = vshll.u32 683565275, %v390
    %v394 = vshrl.u32 2475754826, %v391
    %v395 = vor.u32 %v393, %v394
    %v396 = vshll.u32 2475754826, %v390
    %v397 = vshrl.u32 2131351028, %v391
    %v398 = vor.u32 %v396, %v397
    %v399 = vshll.u32 2131351028, %v390
    %v400 = vshrl.u32 2102212464, %v391
    %v401 = vor.u32 %v399, %v400
    %v402 = vshll.u32 2102212464, %v390
    %v403 = vshrl.u32 920167782, %v391
    %v404 = vor.u32 %v402, %v403
    %v405 = vshll.u32 920167782, %v390
    %v406 = vshrl.u32 1326507024, %v391
    %v407 = vor.u32 %v405, %v406
    %vm408 = vcmp.lt.s32.totalorder %v389, 1
    %vm409 = vcmp.lt.s32.totalorder %v389, 2
    %vm410 = vcmp.lt.s32.totalorder %v389, 3
    %vm411 = vcmp.lt.s32.totalorder %v389, 4
    %v412 = vsel %vm408, %v392, %v395
    %v413 = vsel %vm411, %v401, 2102212464
    %v414 = vsel %vm410, %v398, %v413
    %v415 = vsel %vm409, %v412, %v414
    %v416 = vsel %vm408, %v395, %v398
    %v417 = vsel %vm411, %v404, 920167782
    %v418 = vsel %vm410, %v401, %v417
    %v419 = vsel %vm409, %v416, %v418
    %v420 = vsel %vm408, %v398, %v401
    %v421 = vsel %vm411, %v407, 1326507024
    %v422 = vsel %vm410, %v404, %v421
    %v423 = vsel %vm409, %v420, %v422
    %v424 = vshll.u32 %v384, 8
    %v425 = vmul.u32.u64.compose %v424, %v423
    %v426 = vextract.low.u32 %v425
    %v427 = vextract.high.u32 %v425
    %v428 = vmul.u32.u64.compose %v424, %v419
    %v429 = vextract.low.u32 %v428
    %v430 = vextract.high.u32 %v428
    %v431 = vmul.u32 %v424, %v415
    %v432 = vadd.s32 %v427, %v429
    %vm433 = vc.u32 %v427, %v429
    %v434 = vadd.s32 %v430, 1
    %v435 = vsel %vm433, %v434, %v430
    %v436 = vadd.s32 %v431, %v435
    %v437 = vadd.s32 %v436, 536870912
    %v438 = vshrl.u32 %v437, 30
    %v439 = vshll.u32 %v438, 30
    %v440 = vsub.s32 %v436, %v439
    %vm441 = vcmp.lt.s32.totalorder %v440, 0
    %v442 = vsub.s32 0, %v440
    %v443 = vsel %vm441, %v442, %v440
    %v444 = vclz %v443
    %v445 = vsub.s32 %v444, 2
    %vm446 = vcmp.gt.s32.totalorder 0, %v445
    %v447 = vsel %vm446, 0, %v445
    %v448 = vsub.s32 32, %v447
    %v449 = vshll.u32 %v440, %v447
    %v450 = vshrl.u32 %v432, %v448
    %v451 = vor.u32 %v449, %v450
    %v452 = vsub.s32 4294967266, %v447
    %v453 = vadd.s32 %v452, 127
    %v454 = vshll.u32 %v453, 23
    %v455 = vor.u32 4788187, %v454
    %v456 = vand.u32 2147483647, %v455
    %v458 = vcvt.s32.f32 %v451
    %v459 = vmul.f32 %v458, %v456
    %v460 = vxor.u32 %v459, 2147483648
    %v461 = vsel %vm378, %v460, %v459
    %v462 = vsub.s32 4, %v438
    %v463 = vsel %vm378, %v462, %v438
    %v464 = vsel %vm377, %v62, %v461
    %v465 = vsel %vm377, 0, %v463
    %v466 = vcosq.f32.pop %v464
    %v467 = vsinq.f32.pop %v464
    %vm468 = vweird.f32 %v62
    %v469 = vadd.s32 %v465, 3
    %v470 = vand.u32 %v469, 3
    %vm471 = vcmp.lt.s32.totalorder %v470, 2
    %vm472 = vcmp.eq.s32.totalorder %v470, 0
    %v473 = vxor.u32 %v467, 2147483648
    %v474 = vsel %vm472, %v466, %v473
    %vm475 = vcmp.eq.s32.totalorder %v470, 2
    %v476 = vxor.u32 %v466, 2147483648
    %v477 = vsel %vm475, %v476, %v467
    %v478 = vsel %vm471, %v474, %v477
    %v479 = vsel %vm468, nan, %v478
    %v480 = vand.u32 2147483647, %v60
    %vm481 = vcmp.le.f32.partialorder %v480, 0.7853982
    %vm482 = vcmp.lt.s32.totalorder %v60, 0
    %v483 = vand.u32 %v60, 2139095040
    %v484 = vshrl.u32 %v483, 23
    %v485 = vsub.s32 %v484, 127
    %v486 = vand.u32 2147483647, %v60
    %v487 = vand.u32 %v486, 8388607
    %v488 = vor.u32 %v487, 8388608
    %v489 = vsub.s32 0, %v488
    %v490 = vadd.s32 %v485, 1
    %vm491 = vcmp.gt.s32.totalorder %v490, 0
    %v492 = vsel %vm491, %v490, 0
    %v493 = vshrl.u32 %v492, 5
    %v494 = vand.u32 %v492, 31
    %v495 = vsub.s32 32, %v494
    %v496 = vshrl.u32 683565275, %v495
    %v497 = vshll.u32 683565275, %v494
    %v498 = vshrl.u32 2475754826, %v495
    %v499 = vor.u32 %v497, %v498
    %v500 = vshll.u32 2475754826, %v494
    %v501 = vshrl.u32 2131351028, %v495
    %v502 = vor.u32 %v500, %v501
    %v503 = vshll.u32 2131351028, %v494
    %v504 = vshrl.u32 2102212464, %v495
    %v505 = vor.u32 %v503, %v504
    %v506 = vshll.u32 2102212464, %v494
    %v507 = vshrl.u32 920167782, %v495
    %v508 = vor.u32 %v506, %v507
    %v509 = vshll.u32 920167782, %v494
    %v510 = vshrl.u32 1326507024, %v495
    %v511 = vor.u32 %v509, %v510
    %vm512 = vcmp.lt.s32.totalorder %v493, 1
    %vm513 = vcmp.lt.s32.totalorder %v493, 2
    %vm514 = vcmp.lt.s32.totalorder %v493, 3
    %vm515 = vcmp.lt.s32.totalorder %v493, 4
    %v516 = vsel %vm512, %v496, %v499
    %v517 = vsel %vm515, %v505, 2102212464
    %v518 = vsel %vm514, %v502, %v517
    %v519 = vsel %vm513, %v516, %v518
    %v520 = vsel %vm512, %v499, %v502
    %v521 = vsel %vm515, %v508, 920167782
    %v522 = vsel %vm514, %v505, %v521
    %v523 = vsel %vm513, %v520, %v522
    %v524 = vsel %vm512, %v502, %v505
    %v525 = vsel %vm515, %v511, 1326507024
    %v526 = vsel %vm514, %v508, %v525
    %v527 = vsel %vm513, %v524, %v526
    %v528 = vshll.u32 %v488, 8
    %v529 = vmul.u32.u64.compose %v528, %v527
    %v530 = vextract.low.u32 %v529
    %v531 = vextract.high.u32 %v529
    %v532 = vmul.u32.u64.compose %v528, %v523
    %v533 = vextract.low.u32 %v532
    %v534 = vextract.high.u32 %v532
    %v535 = vmul.u32 %v528, %v519
    %v536 = vadd.s32 %v531, %v533
    %vm537 = vc.u32 %v531, %v533
    %v538 = vadd.s32 %v534, 1
    %v539 = vsel %vm537, %v538, %v534
    %v540 = vadd.s32 %v535, %v539
    %v541 = vadd.s32 %v540, 536870912
    %v542 = vshrl.u32 %v541, 30
    %v543 = vshll.u32 %v542, 30
    %v544 = vsub.s32 %v540, %v543
    %vm545 = vcmp.lt.s32.totalorder %v544, 0
    %v546 = vsub.s32 0, %v544
    %v547 = vsel %vm545, %v546, %v544
    %v548 = vclz %v547
    %v549 = vsub.s32 %v548, 2
    %vm550 = vcmp.gt.s32.totalorder 0, %v549
    %v551 = vsel %vm550, 0, %v549
    %v552 = vsub.s32 32, %v551
    %v553 = vshll.u32 %v544, %v551
    %v554 = vshrl.u32 %v536, %v552
    %v555 = vor.u32 %v553, %v554
    %v556 = vsub.s32 4294967266, %v551
    %v557 = vadd.s32 %v556, 127
    %v558 = vshll.u32 %v557, 23
    %v559 = vor.u32 4788187, %v558
    %v560 = vand.u32 2147483647, %v559
    %v562 = vcvt.s32.f32 %v555
    %v563 = vmul.f32 %v562, %v560
    %v564 = vxor.u32 %v563, 2147483648
    %v565 = vsel %vm482, %v564, %v563
    %v566 = vsub.s32 4, %v542
    %v567 = vsel %vm482, %v566, %v542
    %v568 = vsel %vm481, %v60, %v565
    %v569 = vsel %vm481, 0, %v567
    %v570 = vcosq.f32.pop %v568
    %v571 = vsinq.f32.pop %v568
    %vm572 = vweird.f32 %v60
    %v573 = vadd.s32 %v569, 3
    %v574 = vand.u32 %v573, 3
    %vm575 = vcmp.lt.s32.totalorder %v574, 2
    %vm576 = vcmp.eq.s32.totalorder %v574, 0
    %v577 = vxor.u32 %v571, 2147483648
    %v578 = vsel %vm576, %v570, %v577
    %vm579 = vcmp.eq.s32.totalorder %v574, 2
    %v580 = vxor.u32 %v570, 2147483648
    %v581 = vsel %vm579, %v580, %v571
    %v582 = vsel %vm575, %v578, %v581
    %v583 = vsel %vm572, nan, %v582
    %v584 = vand.u32 2147483647, %v63
    %vm585 = vcmp.le.f32.partialorder %v584, 0.7853982
    %vm586 = vcmp.lt.s32.totalorder %v63, 0
    %v587 = vand.u32 %v63, 2139095040
    %v588 = vshrl.u32 %v587, 23
    %v589 = vsub.s32 %v588, 127
    %v590 = vand.u32 2147483647, %v63
    %v591 = vand.u32 %v590, 8388607
    %v592 = vor.u32 %v591, 8388608
    %v593 = vsub.s32 0, %v592
    %v594 = vadd.s32 %v589, 1
    %vm595 = vcmp.gt.s32.totalorder %v594, 0
    %v596 = vsel %vm595, %v594, 0
    %v597 = vshrl.u32 %v596, 5
    %v598 = vand.u32 %v596, 31
    %v599 = vsub.s32 32, %v598
    %v600 = vshrl.u32 683565275, %v599
    %v601 = vshll.u32 683565275, %v598
    %v602 = vshrl.u32 2475754826, %v599
    %v603 = vor.u32 %v601, %v602
    %v604 = vshll.u32 2475754826, %v598
    %v605 = vshrl.u32 2131351028, %v599
    %v606 = vor.u32 %v604, %v605
    %v607 = vshll.u32 2131351028, %v598
    %v608 = vshrl.u32 2102212464, %v599
    %v609 = vor.u32 %v607, %v608
    %v610 = vshll.u32 2102212464, %v598
    %v611 = vshrl.u32 920167782, %v599
    %v612 = vor.u32 %v610, %v611
    %v613 = vshll.u32 920167782, %v598
    %v614 = vshrl.u32 1326507024, %v599
    %v615 = vor.u32 %v613, %v614
    %vm616 = vcmp.lt.s32.totalorder %v597, 1
    %vm617 = vcmp.lt.s32.totalorder %v597, 2
    %vm618 = vcmp.lt.s32.totalorder %v597, 3
    %vm619 = vcmp.lt.s32.totalorder %v597, 4
    %v620 = vsel %vm616, %v600, %v603
    %v621 = vsel %vm619, %v609, 2102212464
    %v622 = vsel %vm618, %v606, %v621
    %v623 = vsel %vm617, %v620, %v622
    %v624 = vsel %vm616, %v603, %v606
    %v625 = vsel %vm619, %v612, 920167782
    %v626 = vsel %vm618, %v609, %v625
    %v627 = vsel %vm617, %v624, %v626
    %v628 = vsel %vm616, %v606, %v609
    %v629 = vsel %vm619, %v615, 1326507024
    %v630 = vsel %vm618, %v612, %v629
    %v631 = vsel %vm617, %v628, %v630
    %v632 = vshll.u32 %v592, 8
    %v633 = vmul.u32.u64.compose %v632, %v631
    %v634 = vextract.low.u32 %v633
    %v635 = vextract.high.u32 %v633
    %v636 = vmul.u32.u64.compose %v632, %v627
    %v637 = vextract.low.u32 %v636
    %v638 = vextract.high.u32 %v636
    %v639 = vmul.u32 %v632, %v623
    %v640 = vadd.s32 %v635, %v637
    %vm641 = vc.u32 %v635, %v637
    %v642 = vadd.s32 %v638, 1
    %v643 = vsel %vm641, %v642, %v638
    %v644 = vadd.s32 %v639, %v643
    %v645 = vadd.s32 %v644, 536870912
    %v646 = vshrl.u32 %v645, 30
    %v647 = vshll.u32 %v646, 30
    %v648 = vsub.s32 %v644, %v647
    %vm649 = vcmp.lt.s32.totalorder %v648, 0
    %v650 = vsub.s32 0, %v648
    %v651 = vsel %vm649, %v650, %v648
    %v652 = vclz %v651
    %v653 = vsub.s32 %v652, 2
    %vm654 = vcmp.gt.s32.totalorder 0, %v653
    %v655 = vsel %vm654, 0, %v653
    %v656 = vsub.s32 32, %v655
    %v657 = vshll.u32 %v648, %v655
    %v658 = vshrl.u32 %v640, %v656
    %v659 = vor.u32 %v657, %v658
    %v660 = vsub.s32 4294967266, %v655
    %v661 = vadd.s32 %v660, 127
    %v662 = vshll.u32 %v661, 23
    %v663 = vor.u32 4788187, %v662
    %v664 = vand.u32 2147483647, %v663
    %v666 = vcvt.s32.f32 %v659
    %v667 = vmul.f32 %v666, %v664
    %v668 = vxor.u32 %v667, 2147483648
    %v669 = vsel %vm586, %v668, %v667
    %v670 = vsub.s32 4, %v646
    %v671 = vsel %vm586, %v670, %v646
    %v672 = vsel %vm585, %v63, %v669
    %v673 = vsel %vm585, 0, %v671
    %v674 = vcosq.f32.pop %v672
    %v675 = vsinq.f32.pop %v672
    %vm676 = vweird.f32 %v63
    %v677 = vadd.s32 %v673, 3
    %v678 = vand.u32 %v677, 3
    %vm679 = vcmp.lt.s32.totalorder %v678, 2
    %vm680 = vcmp.eq.s32.totalorder %v678, 0
    %v681 = vxor.u32 %v675, 2147483648
    %v682 = vsel %vm680, %v674, %v681
    %vm683 = vcmp.eq.s32.totalorder %v678, 2
    %v684 = vxor.u32 %v674, 2147483648
    %v685 = vsel %vm683, %v684, %v675
    %v686 = vsel %vm679, %v682, %v685
    %v687 = vsel %vm676, nan, %v686
    %v688 = vand.u32 2147483647, %v58
    %vm689 = vcmp.le.f32.partialorder %v688, 0.7853982
    %vm690 = vcmp.lt.s32.totalorder %v58, 0
    %v691 = vand.u32 %v58, 2139095040
    %v692 = vshrl.u32 %v691, 23
    %v693 = vsub.s32 %v692, 127
    %v694 = vand.u32 2147483647, %v58
    %v695 = vand.u32 %v694, 8388607
    %v696 = vor.u32 %v695, 8388608
    %v697 = vsub.s32 0, %v696
    %v698 = vadd.s32 %v693, 1
    %vm699 = vcmp.gt.s32.totalorder %v698, 0
    %v700 = vsel %vm699, %v698, 0
    %v701 = vshrl.u32 %v700, 5
    %v702 = vand.u32 %v700, 31
    %v703 = vsub.s32 32, %v702
    %v704 = vshrl.u32 683565275, %v703
    %v705 = vshll.u32 683565275, %v702
    %v706 = vshrl.u32 2475754826, %v703
    %v707 = vor.u32 %v705, %v706
    %v708 = vshll.u32 2475754826, %v702
    %v709 = vshrl.u32 2131351028, %v703
    %v710 = vor.u32 %v708, %v709
    %v711 = vshll.u32 2131351028, %v702
    %v712 = vshrl.u32 2102212464, %v703
    %v713 = vor.u32 %v711, %v712
    %v714 = vshll.u32 2102212464, %v702
    %v715 = vshrl.u32 920167782, %v703
    %v716 = vor.u32 %v714, %v715
    %v717 = vshll.u32 920167782, %v702
    %v718 = vshrl.u32 1326507024, %v703
    %v719 = vor.u32 %v717, %v718
    %vm720 = vcmp.lt.s32.totalorder %v701, 1
    %vm721 = vcmp.lt.s32.totalorder %v701, 2
    %vm722 = vcmp.lt.s32.totalorder %v701, 3
    %vm723 = vcmp.lt.s32.totalorder %v701, 4
    %v724 = vsel %vm720, %v704, %v707
    %v725 = vsel %vm723, %v713, 2102212464
    %v726 = vsel %vm722, %v710, %v725
    %v727 = vsel %vm721, %v724, %v726
    %v728 = vsel %vm720, %v707, %v710
    %v729 = vsel %vm723, %v716, 920167782
    %v730 = vsel %vm722, %v713, %v729
    %v731 = vsel %vm721, %v728, %v730
    %v732 = vsel %vm720, %v710, %v713
    %v733 = vsel %vm723, %v719, 1326507024
    %v734 = vsel %vm722, %v716, %v733
    %v735 = vsel %vm721, %v732, %v734
    %v736 = vshll.u32 %v696, 8
    %v737 = vmul.u32.u64.compose %v736, %v735
    %v738 = vextract.low.u32 %v737
    %v739 = vextract.high.u32 %v737
    %v740 = vmul.u32.u64.compose %v736, %v731
    %v741 = vextract.low.u32 %v740
    %v742 = vextract.high.u32 %v740
    %v743 = vmul.u32 %v736, %v727
    %v744 = vadd.s32 %v739, %v741
    %vm745 = vc.u32 %v739, %v741
    %v746 = vadd.s32 %v742, 1
    %v747 = vsel %vm745, %v746, %v742
    %v748 = vadd.s32 %v743, %v747
    %v749 = vadd.s32 %v748, 536870912
    %v750 = vshrl.u32 %v749, 30
    %v751 = vshll.u32 %v750, 30
    %v752 = vsub.s32 %v748, %v751
    %vm753 = vcmp.lt.s32.totalorder %v752, 0
    %v754 = vsub.s32 0, %v752
    %v755 = vsel %vm753, %v754, %v752
    %v756 = vclz %v755
    %v757 = vsub.s32 %v756, 2
    %vm758 = vcmp.gt.s32.totalorder 0, %v757
    %v759 = vsel %vm758, 0, %v757
    %v760 = vsub.s32 32, %v759
    %v761 = vshll.u32 %v752, %v759
    %v762 = vshrl.u32 %v744, %v760
    %v763 = vor.u32 %v761, %v762
    %v764 = vsub.s32 4294967266, %v759
    %v765 = vadd.s32 %v764, 127
    %v766 = vshll.u32 %v765, 23
    %v767 = vor.u32 4788187, %v766
    %v768 = vand.u32 2147483647, %v767
    %v770 = vcvt.s32.f32 %v763
    %v771 = vmul.f32 %v770, %v768
    %v772 = vxor.u32 %v771, 2147483648
    %v773 = vsel %vm690, %v772, %v771
    %v774 = vsub.s32 4, %v750
    %v775 = vsel %vm690, %v774, %v750
    %v776 = vsel %vm689, %v58, %v773
    %v777 = vsel %vm689, 0, %v775
    %v778 = vcosq.f32.pop %v776
    %v779 = vsinq.f32.pop %v776
    %vm780 = vweird.f32 %v58
    %v781 = vand.u32 %v777, 3
    %vm782 = vcmp.lt.s32.totalorder %v781, 2
    %vm783 = vcmp.eq.s32.totalorder %v781, 0
    %v784 = vxor.u32 %v779, 2147483648
    %v785 = vsel %vm783, %v778, %v784
    %vm786 = vcmp.eq.s32.totalorder %v781, 2
    %v787 = vxor.u32 %v778, 2147483648
    %v788 = vsel %vm786, %v787, %v779
    %v789 = vsel %vm782, %v785, %v788
    %v790 = vsel %vm780, nan, %v789
    %v791 = vand.u32 2147483647, %v61
    %vm792 = vcmp.le.f32.partialorder %v791, 0.7853982
    %vm793 = vcmp.lt.s32.totalorder %v61, 0
    %v794 = vand.u32 %v61, 2139095040
    %v795 = vshrl.u32 %v794, 23
    %v796 = vsub.s32 %v795, 127
    %v797 = vand.u32 2147483647, %v61
    %v798 = vand.u32 %v797, 8388607
    %v799 = vor.u32 %v798, 8388608
    %v800 = vsub.s32 0, %v799
    %v801 = vadd.s32 %v796, 1
    %vm802 = vcmp.gt.s32.totalorder %v801, 0
    %v803 = vsel %vm802, %v801, 0
    %v804 = vshrl.u32 %v803, 5
    %v805 = vand.u32 %v803, 31
    %v806 = vsub.s32 32, %v805
    %v807 = vshrl.u32 683565275, %v806
    %v808 = vshll.u32 683565275, %v805
    %v809 = vshrl.u32 2475754826, %v806
    %v810 = vor.u32 %v808, %v809
    %v811 = vshll.u32 2475754826, %v805
    %v812 = vshrl.u32 2131351028, %v806
    %v813 = vor.u32 %v811, %v812
    %v814 = vshll.u32 2131351028, %v805
    %v815 = vshrl.u32 2102212464, %v806
    %v816 = vor.u32 %v814, %v815
    %v817 = vshll.u32 2102212464, %v805
    %v818 = vshrl.u32 920167782, %v806
    %v819 = vor.u32 %v817, %v818
    %v820 = vshll.u32 920167782, %v805
    %v821 = vshrl.u32 1326507024, %v806
    %v822 = vor.u32 %v820, %v821
    %vm823 = vcmp.lt.s32.totalorder %v804, 1
    %vm824 = vcmp.lt.s32.totalorder %v804, 2
    %vm825 = vcmp.lt.s32.totalorder %v804, 3
    %vm826 = vcmp.lt.s32.totalorder %v804, 4
    %v827 = vsel %vm823, %v807, %v810
    %v828 = vsel %vm826, %v816, 2102212464
    %v829 = vsel %vm825, %v813, %v828
    %v830 = vsel %vm824, %v827, %v829
    %v831 = vsel %vm823, %v810, %v813
    %v832 = vsel %vm826, %v819, 920167782
    %v833 = vsel %vm825, %v816, %v832
    %v834 = vsel %vm824, %v831, %v833
    %v835 = vsel %vm823, %v813, %v816
    %v836 = vsel %vm826, %v822, 1326507024
    %v837 = vsel %vm825, %v819, %v836
    %v838 = vsel %vm824, %v835, %v837
    %v839 = vshll.u32 %v799, 8
    %v840 = vmul.u32.u64.compose %v839, %v838
    %v841 = vextract.low.u32 %v840
    %v842 = vextract.high.u32 %v840
    %v843 = vmul.u32.u64.compose %v839, %v834
    %v844 = vextract.low.u32 %v843
    %v845 = vextract.high.u32 %v843
    %v846 = vmul.u32 %v839, %v830
    %v847 = vadd.s32 %v842, %v844
    %vm848 = vc.u32 %v842, %v844
    %v849 = vadd.s32 %v845, 1
    %v850 = vsel %vm848, %v849, %v845
    %v851 = vadd.s32 %v846, %v850
    %v852 = vadd.s32 %v851, 536870912
    %v853 = vshrl.u32 %v852, 30
    %v854 = vshll.u32 %v853, 30
    %v855 = vsub.s32 %v851, %v854
    %vm856 = vcmp.lt.s32.totalorder %v855, 0
    %v857 = vsub.s32 0, %v855
    %v858 = vsel %vm856, %v857, %v855
    %v859 = vclz %v858
    %v860 = vsub.s32 %v859, 2
    %vm861 = vcmp.gt.s32.totalorder 0, %v860
    %v862 = vsel %vm861, 0, %v860
    %v863 = vsub.s32 32, %v862
    %v864 = vshll.u32 %v855, %v862
    %v865 = vshrl.u32 %v847, %v863
    %v866 = vor.u32 %v864, %v865
    %v867 = vsub.s32 4294967266, %v862
    %v868 = vadd.s32 %v867, 127
    %v869 = vshll.u32 %v868, 23
    %v870 = vor.u32 4788187, %v869
    %v871 = vand.u32 2147483647, %v870
    %v873 = vcvt.s32.f32 %v866
    %v874 = vmul.f32 %v873, %v871
    %v875 = vxor.u32 %v874, 2147483648
    %v876 = vsel %vm793, %v875, %v874
    %v877 = vsub.s32 4, %v853
    %v878 = vsel %vm793, %v877, %v853
    %v879 = vsel %vm792, %v61, %v876
    %v880 = vsel %vm792, 0, %v878
    %v881 = vcosq.f32.pop %v879
    %v882 = vsinq.f32.pop %v879
    %vm883 = vweird.f32 %v61
    %v884 = vand.u32 %v880, 3
    %vm885 = vcmp.lt.s32.totalorder %v884, 2
    %vm886 = vcmp.eq.s32.totalorder %v884, 0
    %v887 = vxor.u32 %v882, 2147483648
    %v888 = vsel %vm886, %v881, %v887
    %vm889 = vcmp.eq.s32.totalorder %v884, 2
    %v890 = vxor.u32 %v881, 2147483648
    %v891 = vsel %vm889, %v890, %v882
    %v892 = vsel %vm885, %v888, %v891
    %v893 = vsel %vm883, nan, %v892
    %v894 = vand.u32 2147483647, %v59
    %vm895 = vcmp.le.f32.partialorder %v894, 0.7853982
    %vm896 = vcmp.lt.s32.totalorder %v59, 0
    %v897 = vand.u32 %v59, 2139095040
    %v898 = vshrl.u32 %v897, 23
    %v899 = vsub.s32 %v898, 127
    %v900 = vand.u32 2147483647, %v59
    %v901 = vand.u32 %v900, 8388607
    %v902 = vor.u32 %v901, 8388608
    %v903 = vsub.s32 0, %v902
    %v904 = vadd.s32 %v899, 1
    %vm905 = vcmp.gt.s32.totalorder %v904, 0
    %v906 = vsel %vm905, %v904, 0
    %v907 = vshrl.u32 %v906, 5
    %v908 = vand.u32 %v906, 31
    %v909 = vsub.s32 32, %v908
    %v910 = vshrl.u32 683565275, %v909
    %v911 = vshll.u32 683565275, %v908
    %v912 = vshrl.u32 2475754826, %v909
    %v913 = vor.u32 %v911, %v912
    %v914 = vshll.u32 2475754826, %v908
    %v915 = vshrl.u32 2131351028, %v909
    %v916 = vor.u32 %v914, %v915
    %v917 = vshll.u32 2131351028, %v908
    %v918 = vshrl.u32 2102212464, %v909
    %v919 = vor.u32 %v917, %v918
    %v920 = vshll.u32 2102212464, %v908
    %v921 = vshrl.u32 920167782, %v909
    %v922 = vor.u32 %v920, %v921
    %v923 = vshll.u32 920167782, %v908
    %v924 = vshrl.u32 1326507024, %v909
    %v925 = vor.u32 %v923, %v924
    %vm926 = vcmp.lt.s32.totalorder %v907, 1
    %vm927 = vcmp.lt.s32.totalorder %v907, 2
    %vm928 = vcmp.lt.s32.totalorder %v907, 3
    %vm929 = vcmp.lt.s32.totalorder %v907, 4
    %v930 = vsel %vm926, %v910, %v913
    %v931 = vsel %vm929, %v919, 2102212464
    %v932 = vsel %vm928, %v916, %v931
    %v933 = vsel %vm927, %v930, %v932
    %v934 = vsel %vm926, %v913, %v916
    %v935 = vsel %vm929, %v922, 920167782
    %v936 = vsel %vm928, %v919, %v935
    %v937 = vsel %vm927, %v934, %v936
    %v938 = vsel %vm926, %v916, %v919
    %v939 = vsel %vm929, %v925, 1326507024
    %v940 = vsel %vm928, %v922, %v939
    %v941 = vsel %vm927, %v938, %v940
    %v942 = vshll.u32 %v902, 8
    %v943 = vmul.u32.u64.compose %v942, %v941
    %v944 = vextract.low.u32 %v943
    %v945 = vextract.high.u32 %v943
    %v946 = vmul.u32.u64.compose %v942, %v937
    %v947 = vextract.low.u32 %v946
    %v948 = vextract.high.u32 %v946
    %v949 = vmul.u32 %v942, %v933
    %v950 = vadd.s32 %v945, %v947
    %vm951 = vc.u32 %v945, %v947
    %v952 = vadd.s32 %v948, 1
    %v953 = vsel %vm951, %v952, %v948
    %v954 = vadd.s32 %v949, %v953
    %v955 = vadd.s32 %v954, 536870912
    %v956 = vshrl.u32 %v955, 30
    %v957 = vshll.u32 %v956, 30
    %v958 = vsub.s32 %v954, %v957
    %vm959 = vcmp.lt.s32.totalorder %v958, 0
    %v960 = vsub.s32 0, %v958
    %v961 = vsel %vm959, %v960, %v958
    %v962 = vclz %v961
    %v963 = vsub.s32 %v962, 2
    %vm964 = vcmp.gt.s32.totalorder 0, %v963
    %v965 = vsel %vm964, 0, %v963
    %v966 = vsub.s32 32, %v965
    %v967 = vshll.u32 %v958, %v965
    %v968 = vshrl.u32 %v950, %v966
    %v969 = vor.u32 %v967, %v968
    %v970 = vsub.s32 4294967266, %v965
    %v971 = vadd.s32 %v970, 127
    %v972 = vshll.u32 %v971, 23
    %v973 = vor.u32 4788187, %v972
    %v974 = vand.u32 2147483647, %v973
    %v976 = vcvt.s32.f32 %v969
    %v977 = vmul.f32 %v976, %v974
    %v978 = vxor.u32 %v977, 2147483648
    %v979 = vsel %vm896, %v978, %v977
    %v980 = vsub.s32 4, %v956
    %v981 = vsel %vm896, %v980, %v956
    %v982 = vsel %vm895, %v59, %v979
    %v983 = vsel %vm895, 0, %v981
    %v984 = vcosq.f32.pop %v982
    %v985 = vsinq.f32.pop %v982
    %vm986 = vweird.f32 %v59
    %v987 = vand.u32 %v983, 3
    %vm988 = vcmp.lt.s32.totalorder %v987, 2
    %vm989 = vcmp.eq.s32.totalorder %v987, 0
    %v990 = vxor.u32 %v985, 2147483648
    %v991 = vsel %vm989, %v984, %v990
    %vm992 = vcmp.eq.s32.totalorder %v987, 2
    %v993 = vxor.u32 %v984, 2147483648
    %v994 = vsel %vm992, %v993, %v985
    %v995 = vsel %vm988, %v991, %v994
    %v996 = vsel %vm986, nan, %v995
    %v997 = vand.u32 2147483647, %v62
    %vm998 = vcmp.le.f32.partialorder %v997, 0.7853982
    %vm999 = vcmp.lt.s32.totalorder %v62, 0
    %v1000 = vand.u32 %v62, 2139095040
    %v1001 = vshrl.u32 %v1000, 23
    %v1002 = vsub.s32 %v1001, 127
    %v1003 = vand.u32 2147483647, %v62
    %v1004 = vand.u32 %v1003, 8388607
    %v1005 = vor.u32 %v1004, 8388608
    %v1006 = vsub.s32 0, %v1005
    %v1007 = vadd.s32 %v1002, 1
    %vm1008 = vcmp.gt.s32.totalorder %v1007, 0
    %v1009 = vsel %vm1008, %v1007, 0
    %v1010 = vshrl.u32 %v1009, 5
    %v1011 = vand.u32 %v1009, 31
    %v1012 = vsub.s32 32, %v1011
    %v1013 = vshrl.u32 683565275, %v1012
    %v1014 = vshll.u32 683565275, %v1011
    %v1015 = vshrl.u32 2475754826, %v1012
    %v1016 = vor.u32 %v1014, %v1015
    %v1017 = vshll.u32 2475754826, %v1011
    %v1018 = vshrl.u32 2131351028, %v1012
    %v1019 = vor.u32 %v1017, %v1018
    %v1020 = vshll.u32 2131351028, %v1011
    %v1021 = vshrl.u32 2102212464, %v1012
    %v1022 = vor.u32 %v1020, %v1021
    %v1023 = vshll.u32 2102212464, %v1011
    %v1024 = vshrl.u32 920167782, %v1012
    %v1025 = vor.u32 %v1023, %v1024
    %v1026 = vshll.u32 920167782, %v1011
    %v1027 = vshrl.u32 1326507024, %v1012
    %v1028 = vor.u32 %v1026, %v1027
    %vm1029 = vcmp.lt.s32.totalorder %v1010, 1
    %vm1030 = vcmp.lt.s32.totalorder %v1010, 2
    %vm1031 = vcmp.lt.s32.totalorder %v1010, 3
    %vm1032 = vcmp.lt.s32.totalorder %v1010, 4
    %v1033 = vsel %vm1029, %v1013, %v1016
    %v1034 = vsel %vm1032, %v1022, 2102212464
    %v1035 = vsel %vm1031, %v1019, %v1034
    %v1036 = vsel %vm1030, %v1033, %v1035
    %v1037 = vsel %vm1029, %v1016, %v1019
    %v1038 = vsel %vm1032, %v1025, 920167782
    %v1039 = vsel %vm1031, %v1022, %v1038
    %v1040 = vsel %vm1030, %v1037, %v1039
    %v1041 = vsel %vm1029, %v1019, %v1022
    %v1042 = vsel %vm1032, %v1028, 1326507024
    %v1043 = vsel %vm1031, %v1025, %v1042
    %v1044 = vsel %vm1030, %v1041, %v1043
    %v1045 = vshll.u32 %v1005, 8
    %v1046 = vmul.u32.u64.compose %v1045, %v1044
    %v1047 = vextract.low.u32 %v1046
    %v1048 = vextract.high.u32 %v1046
    %v1049 = vmul.u32.u64.compose %v1045, %v1040
    %v1050 = vextract.low.u32 %v1049
    %v1051 = vextract.high.u32 %v1049
    %v1052 = vmul.u32 %v1045, %v1036
    %v1053 = vadd.s32 %v1048, %v1050
    %vm1054 = vc.u32 %v1048, %v1050
    %v1055 = vadd.s32 %v1051, 1
    %v1056 = vsel %vm1054, %v1055, %v1051
    %v1057 = vadd.s32 %v1052, %v1056
    %v1058 = vadd.s32 %v1057, 536870912
    %v1059 = vshrl.u32 %v1058, 30
    %v1060 = vshll.u32 %v1059, 30
    %v1061 = vsub.s32 %v1057, %v1060
    %vm1062 = vcmp.lt.s32.totalorder %v1061, 0
    %v1063 = vsub.s32 0, %v1061
    %v1064 = vsel %vm1062, %v1063, %v1061
    %v1065 = vclz %v1064
    %v1066 = vsub.s32 %v1065, 2
    %vm1067 = vcmp.gt.s32.totalorder 0, %v1066
    %v1068 = vsel %vm1067, 0, %v1066
    %v1069 = vsub.s32 32, %v1068
    %v1070 = vshll.u32 %v1061, %v1068
    %v1071 = vshrl.u32 %v1053, %v1069
    %v1072 = vor.u32 %v1070, %v1071
    %v1073 = vsub.s32 4294967266, %v1068
    %v1074 = vadd.s32 %v1073, 127
    %v1075 = vshll.u32 %v1074, 23
    %v1076 = vor.u32 4788187, %v1075
    %v1077 = vand.u32 2147483647, %v1076
    %v1079 = vcvt.s32.f32 %v1072
    %v1080 = vmul.f32 %v1079, %v1077
    %v1081 = vxor.u32 %v1080, 2147483648
    %v1082 = vsel %vm999, %v1081, %v1080
    %v1083 = vsub.s32 4, %v1059
    %v1084 = vsel %vm999, %v1083, %v1059
    %v1085 = vsel %vm998, %v62, %v1082
    %v1086 = vsel %vm998, 0, %v1084
    %v1087 = vcosq.f32.pop %v1085
    %v1088 = vsinq.f32.pop %v1085
    %vm1089 = vweird.f32 %v62
    %v1090 = vand.u32 %v1086, 3
    %vm1091 = vcmp.lt.s32.totalorder %v1090, 2
    %vm1092 = vcmp.eq.s32.totalorder %v1090, 0
    %v1093 = vxor.u32 %v1088, 2147483648
    %v1094 = vsel %vm1092, %v1087, %v1093
    %vm1095 = vcmp.eq.s32.totalorder %v1090, 2
    %v1096 = vxor.u32 %v1087, 2147483648
    %v1097 = vsel %vm1095, %v1096, %v1088
    %v1098 = vsel %vm1091, %v1094, %v1097
    %v1099 = vsel %vm1089, nan, %v1098
    %v1100 = vand.u32 2147483647, %v60
    %vm1101 = vcmp.le.f32.partialorder %v1100, 0.7853982
    %vm1102 = vcmp.lt.s32.totalorder %v60, 0
    %v1103 = vand.u32 %v60, 2139095040
    %v1104 = vshrl.u32 %v1103, 23
    %v1105 = vsub.s32 %v1104, 127
    %v1106 = vand.u32 2147483647, %v60
    %v1107 = vand.u32 %v1106, 8388607
    %v1108 = vor.u32 %v1107, 8388608
    %v1109 = vsub.s32 0, %v1108
    %v1110 = vadd.s32 %v1105, 1
    %vm1111 = vcmp.gt.s32.totalorder %v1110, 0
    %v1112 = vsel %vm1111, %v1110, 0
    %v1113 = vshrl.u32 %v1112, 5
    %v1114 = vand.u32 %v1112, 31
    %v1115 = vsub.s32 32, %v1114
    %v1116 = vshrl.u32 683565275, %v1115
    %v1117 = vshll.u32 683565275, %v1114
    %v1118 = vshrl.u32 2475754826, %v1115
    %v1119 = vor.u32 %v1117, %v1118
    %v1120 = vshll.u32 2475754826, %v1114
    %v1121 = vshrl.u32 2131351028, %v1115
    %v1122 = vor.u32 %v1120, %v1121
    %v1123 = vshll.u32 2131351028, %v1114
    %v1124 = vshrl.u32 2102212464, %v1115
    %v1125 = vor.u32 %v1123, %v1124
    %v1126 = vshll.u32 2102212464, %v1114
    %v1127 = vshrl.u32 920167782, %v1115
    %v1128 = vor.u32 %v1126, %v1127
    %v1129 = vshll.u32 920167782, %v1114
    %v1130 = vshrl.u32 1326507024, %v1115
    %v1131 = vor.u32 %v1129, %v1130
    %vm1132 = vcmp.lt.s32.totalorder %v1113, 1
    %vm1133 = vcmp.lt.s32.totalorder %v1113, 2
    %vm1134 = vcmp.lt.s32.totalorder %v1113, 3
    %vm1135 = vcmp.lt.s32.totalorder %v1113, 4
    %v1136 = vsel %vm1132, %v1116, %v1119
    %v1137 = vsel %vm1135, %v1125, 2102212464
    %v1138 = vsel %vm1134, %v1122, %v1137
    %v1139 = vsel %vm1133, %v1136, %v1138
    %v1140 = vsel %vm1132, %v1119, %v1122
    %v1141 = vsel %vm1135, %v1128, 920167782
    %v1142 = vsel %vm1134, %v1125, %v1141
    %v1143 = vsel %vm1133, %v1140, %v1142
    %v1144 = vsel %vm1132, %v1122, %v1125
    %v1145 = vsel %vm1135, %v1131, 1326507024
    %v1146 = vsel %vm1134, %v1128, %v1145
    %v1147 = vsel %vm1133, %v1144, %v1146
    %v1148 = vshll.u32 %v1108, 8
    %v1149 = vmul.u32.u64.compose %v1148, %v1147
    %v1150 = vextract.low.u32 %v1149
    %v1151 = vextract.high.u32 %v1149
    %v1152 = vmul.u32.u64.compose %v1148, %v1143
    %v1153 = vextract.low.u32 %v1152
    %v1154 = vextract.high.u32 %v1152
    %v1155 = vmul.u32 %v1148, %v1139
    %v1156 = vadd.s32 %v1151, %v1153
    %vm1157 = vc.u32 %v1151, %v1153
    %v1158 = vadd.s32 %v1154, 1
    %v1159 = vsel %vm1157, %v1158, %v1154
    %v1160 = vadd.s32 %v1155, %v1159
    %v1161 = vadd.s32 %v1160, 536870912
    %v1162 = vshrl.u32 %v1161, 30
    %v1163 = vshll.u32 %v1162, 30
    %v1164 = vsub.s32 %v1160, %v1163
    %vm1165 = vcmp.lt.s32.totalorder %v1164, 0
    %v1166 = vsub.s32 0, %v1164
    %v1167 = vsel %vm1165, %v1166, %v1164
    %v1168 = vclz %v1167
    %v1169 = vsub.s32 %v1168, 2
    %vm1170 = vcmp.gt.s32.totalorder 0, %v1169
    %v1171 = vsel %vm1170, 0, %v1169
    %v1172 = vsub.s32 32, %v1171
    %v1173 = vshll.u32 %v1164, %v1171
    %v1174 = vshrl.u32 %v1156, %v1172
    %v1175 = vor.u32 %v1173, %v1174
    %v1176 = vsub.s32 4294967266, %v1171
    %v1177 = vadd.s32 %v1176, 127
    %v1178 = vshll.u32 %v1177, 23
    %v1179 = vor.u32 4788187, %v1178
    %v1180 = vand.u32 2147483647, %v1179
    %v1182 = vcvt.s32.f32 %v1175
    %v1183 = vmul.f32 %v1182, %v1180
    %v1184 = vxor.u32 %v1183, 2147483648
    %v1185 = vsel %vm1102, %v1184, %v1183
    %v1186 = vsub.s32 4, %v1162
    %v1187 = vsel %vm1102, %v1186, %v1162
    %v1188 = vsel %vm1101, %v60, %v1185
    %v1189 = vsel %vm1101, 0, %v1187
    %v1190 = vcosq.f32.pop %v1188
    %v1191 = vsinq.f32.pop %v1188
    %vm1192 = vweird.f32 %v60
    %v1193 = vand.u32 %v1189, 3
    %vm1194 = vcmp.lt.s32.totalorder %v1193, 2
    %vm1195 = vcmp.eq.s32.totalorder %v1193, 0
    %v1196 = vxor.u32 %v1191, 2147483648
    %v1197 = vsel %vm1195, %v1190, %v1196
    %vm1198 = vcmp.eq.s32.totalorder %v1193, 2
    %v1199 = vxor.u32 %v1190, 2147483648
    %v1200 = vsel %vm1198, %v1199, %v1191
    %v1201 = vsel %vm1194, %v1197, %v1200
    %v1202 = vsel %vm1192, nan, %v1201
    %v1203 = vand.u32 2147483647, %v63
    %vm1204 = vcmp.le.f32.partialorder %v1203, 0.7853982
    %vm1205 = vcmp.lt.s32.totalorder %v63, 0
    %v1206 = vand.u32 %v63, 2139095040
    %v1207 = vshrl.u32 %v1206, 23
    %v1208 = vsub.s32 %v1207, 127
    %v1209 = vand.u32 2147483647, %v63
    %v1210 = vand.u32 %v1209, 8388607
    %v1211 = vor.u32 %v1210, 8388608
    %v1212 = vsub.s32 0, %v1211
    %v1213 = vadd.s32 %v1208, 1
    %vm1214 = vcmp.gt.s32.totalorder %v1213, 0
    %v1215 = vsel %vm1214, %v1213, 0
    %v1216 = vshrl.u32 %v1215, 5
    %v1217 = vand.u32 %v1215, 31
    %v1218 = vsub.s32 32, %v1217
    %v1219 = vshrl.u32 683565275, %v1218
    %v1220 = vshll.u32 683565275, %v1217
    %v1221 = vshrl.u32 2475754826, %v1218
    %v1222 = vor.u32 %v1220, %v1221
    %v1223 = vshll.u32 2475754826, %v1217
    %v1224 = vshrl.u32 2131351028, %v1218
    %v1225 = vor.u32 %v1223, %v1224
    %v1226 = vshll.u32 2131351028, %v1217
    %v1227 = vshrl.u32 2102212464, %v1218
    %v1228 = vor.u32 %v1226, %v1227
    %v1229 = vshll.u32 2102212464, %v1217
    %v1230 = vshrl.u32 920167782, %v1218
    %v1231 = vor.u32 %v1229, %v1230
    %v1232 = vshll.u32 920167782, %v1217
    %v1233 = vshrl.u32 1326507024, %v1218
    %v1234 = vor.u32 %v1232, %v1233
    %vm1235 = vcmp.lt.s32.totalorder %v1216, 1
    %vm1236 = vcmp.lt.s32.totalorder %v1216, 2
    %vm1237 = vcmp.lt.s32.totalorder %v1216, 3
    %vm1238 = vcmp.lt.s32.totalorder %v1216, 4
    %v1239 = vsel %vm1235, %v1219, %v1222
    %v1240 = vsel %vm1238, %v1228, 2102212464
    %v1241 = vsel %vm1237, %v1225, %v1240
    %v1242 = vsel %vm1236, %v1239, %v1241
    %v1243 = vsel %vm1235, %v1222, %v1225
    %v1244 = vsel %vm1238, %v1231, 920167782
    %v1245 = vsel %vm1237, %v1228, %v1244
    %v1246 = vsel %vm1236, %v1243, %v1245
    %v1247 = vsel %vm1235, %v1225, %v1228
    %v1248 = vsel %vm1238, %v1234, 1326507024
    %v1249 = vsel %vm1237, %v1231, %v1248
    %v1250 = vsel %vm1236, %v1247, %v1249
    %v1251 = vshll.u32 %v1211, 8
    %v1252 = vmul.u32.u64.compose %v1251, %v1250
    %v1253 = vextract.low.u32 %v1252
    %v1254 = vextract.high.u32 %v1252
    %v1255 = vmul.u32.u64.compose %v1251, %v1246
    %v1256 = vextract.low.u32 %v1255
    %v1257 = vextract.high.u32 %v1255
    %v1258 = vmul.u32 %v1251, %v1242
    %v1259 = vadd.s32 %v1254, %v1256
    %vm1260 = vc.u32 %v1254, %v1256
    %v1261 = vadd.s32 %v1257, 1
    %v1262 = vsel %vm1260, %v1261, %v1257
    %v1263 = vadd.s32 %v1258, %v1262
    %v1264 = vadd.s32 %v1263, 536870912
    %v1265 = vshrl.u32 %v1264, 30
    %v1266 = vshll.u32 %v1265, 30
    %v1267 = vsub.s32 %v1263, %v1266
    %vm1268 = vcmp.lt.s32.totalorder %v1267, 0
    %v1269 = vsub.s32 0, %v1267
    %v1270 = vsel %vm1268, %v1269, %v1267
    %v1271 = vclz %v1270
    %v1272 = vsub.s32 %v1271, 2
    %vm1273 = vcmp.gt.s32.totalorder 0, %v1272
    %v1274 = vsel %vm1273, 0, %v1272
    %v1275 = vsub.s32 32, %v1274
    %v1276 = vshll.u32 %v1267, %v1274
    %v1277 = vshrl.u32 %v1259, %v1275
    %v1278 = vor.u32 %v1276, %v1277
    %v1279 = vsub.s32 4294967266, %v1274
    %v1280 = vadd.s32 %v1279, 127
    %v1281 = vshll.u32 %v1280, 23
    %v1282 = vor.u32 4788187, %v1281
    %v1283 = vand.u32 2147483647, %v1282
    %v1285 = vcvt.s32.f32 %v1278
    %v1286 = vmul.f32 %v1285, %v1283
    %v1287 = vxor.u32 %v1286, 2147483648
    %v1288 = vsel %vm1205, %v1287, %v1286
    %v1289 = vsub.s32 4, %v1265
    %v1290 = vsel %vm1205, %v1289, %v1265
    %v1291 = vsel %vm1204, %v63, %v1288
    %v1292 = vsel %vm1204, 0, %v1290
    %v1293 = vcosq.f32.pop %v1291
    %v1294 = vsinq.f32.pop %v1291
    %vm1295 = vweird.f32 %v63
    %v1296 = vand.u32 %v1292, 3
    %vm1297 = vcmp.lt.s32.totalorder %v1296, 2
    %vm1298 = vcmp.eq.s32.totalorder %v1296, 0
    %v1299 = vxor.u32 %v1294, 2147483648
    %v1300 = vsel %vm1298, %v1293, %v1299
    %vm1301 = vcmp.eq.s32.totalorder %v1296, 2
    %v1302 = vxor.u32 %v1293, 2147483648
    %v1303 = vsel %vm1301, %v1302, %v1294
    %v1304 = vsel %vm1297, %v1300, %v1303
    %v1305 = vsel %vm1295, nan, %v1304
    %1306 = vrot.lane.b32.xlu0 %v167, 127
    %v1307 = vpop.permute.xlu0 %1306
    %1308 = vrot.lane.b32.xlu0 %v375, 127
    %v1309 = vpop.permute.xlu0 %1308
    %1310 = vrot.lane.b32.xlu0 %v583, 127
    %v1311 = vpop.permute.xlu0 %1310
    %1312 = vrot.lane.b32.xlu0 %v271, 127
    %v1313 = vpop.permute.xlu0 %1312
    %1314 = vrot.lane.b32.xlu0 %v479, 127
    %v1315 = vpop.permute.xlu0 %1314
    %1316 = vrot.lane.b32.xlu0 %v687, 127
    %v1317 = vpop.permute.xlu0 %1316
    %v1318 = vlaneseq
    %v1319 = vand.u32 %v1318, 127
    %vm1320 = vcmp.lt.s32.totalorder %v1319, 127
    %v1321 = vsel %vm1320, %v1307, %v1313
    %v1322 = vsel %vm1320, %v1309, %v1315
    %v1323 = vsel %vm1320, %v1311, %v1317
    %1324 = vrot.lane.b32.xlu0 %v790, 127
    %v1325 = vpop.permute.xlu0 %1324
    %1326 = vrot.lane.b32.xlu0 %v996, 127
    %v1327 = vpop.permute.xlu0 %1326
    %1328 = vrot.lane.b32.xlu0 %v1202, 127
    %v1329 = vpop.permute.xlu0 %1328
    %1330 = vrot.lane.b32.xlu0 %v893, 127
    %v1331 = vpop.permute.xlu0 %1330
    %1332 = vrot.lane.b32.xlu0 %v1099, 127
    %v1333 = vpop.permute.xlu0 %1332
    %1334 = vrot.lane.b32.xlu0 %v1305, 127
    %v1335 = vpop.permute.xlu0 %1334
    %v1336 = vsel %vm1320, %v1325, %v1331
    %v1337 = vsel %vm1320, %v1327, %v1333
    %v1338 = vsel %vm1320, %v1329, %v1335
    %v1339 = vmul.f32 %v790, %v1336
    %v1340 = vmul.f32 %v996, %v1337
    %v1341 = vmul.f32 %v1202, %v1338
    %v1342 = vmul.f32 %v167, %v1321
    %v1343 = vmul.f32 %v375, %v1322
    %v1344 = vmul.f32 %v583, %v1323
    %s1345 = sld [smem:[#allocation2]]
    %v1346 = vstv %s1345
    %v1347 = vmul.f32 %v1346, %v167
    %s1348 = sld [smem:[#allocation2 + $0x9]]
    %v1349 = vstv %s1348
    %v1350 = vmul.f32 %v1349, %v1339
    %v1351 = vadd.f32 %v1347, %v1350
    %s1352 = sld [smem:[#allocation2 + $0x12]]
    %v1353 = vstv %s1352
    %v1354 = vmul.f32 %v1353, %v1342
    %v1355 = vadd.f32 %v1351, %v1354
    %s1356 = sld [smem:[#allocation2 + $0x1b]]
    %v1357 = vstv %s1356
    %v1358 = vmul.f32 %v1357, %v1336
    %v1359 = vadd.f32 %v1355, %v1358
    %s1360 = sld [smem:[#allocation2 + $0x1]]
    %v1361 = vstv %s1360
    %v1362 = vmul.f32 %v1361, %v375
    %s1363 = sld [smem:[#allocation2 + $0xa]]
    %v1364 = vstv %s1363
    %v1365 = vmul.f32 %v1364, %v1340
    %v1366 = vadd.f32 %v1362, %v1365
    %s1367 = sld [smem:[#allocation2 + $0x13]]
    %v1368 = vstv %s1367
    %v1369 = vmul.f32 %v1368, %v1343
    %v1370 = vadd.f32 %v1366, %v1369
    %s1371 = sld [smem:[#allocation2 + $0x1c]]
    %v1372 = vstv %s1371
    %v1373 = vmul.f32 %v1372, %v1337
    %v1374 = vadd.f32 %v1370, %v1373
    %v1375 = vadd.f32 %v1359, %v1374
    %s1376 = sld [smem:[#allocation2 + $0x2]]
    %v1377 = vstv %s1376
    %v1378 = vmul.f32 %v1377, %v583
    %s1379 = sld [smem:[#allocation2 + $0xb]]
    %v1380 = vstv %s1379
    %v1381 = vmul.f32 %v1380, %v1341
    %v1382 = vadd.f32 %v1378, %v1381
    %s1383 = sld [smem:[#allocation2 + $0x14]]
    %v1384 = vstv %s1383
    %v1385 = vmul.f32 %v1384, %v1344
    %v1386 = vadd.f32 %v1382, %v1385
    %s1387 = sld [smem:[#allocation2 + $0x1d]]
    %v1388 = vstv %s1387
    %v1389 = vmul.f32 %v1388, %v1338
    %v1390 = vadd.f32 %v1386, %v1389
    %v1391 = vadd.f32 %v1375, %v1390
    %1392 = vst [vmem:[#allocation9] sm:$0xff] %v1391
    %s1393 = sld [smem:[#allocation2 + $0x3]]
    %v1394 = vstv %s1393
    %v1395 = vmul.f32 %v1394, %v167
    %s1396 = sld [smem:[#allocation2 + $0xc]]
    %v1397 = vstv %s1396
    %v1398 = vmul.f32 %v1397, %v1339
    %v1399 = vadd.f32 %v1395, %v1398
    %s1400 = sld [smem:[#allocation2 + $0x15]]
    %v1401 = vstv %s1400
    %v1402 = vmul.f32 %v1401, %v1342
    %v1403 = vadd.f32 %v1399, %v1402
    %s1404 = sld [smem:[#allocation2 + $0x1e]]
    %v1405 = vstv %s1404
    %v1406 = vmul.f32 %v1405, %v1336
    %v1407 = vadd.f32 %v1403, %v1406
    %s1408 = sld [smem:[#allocation2 + $0x4]]
    %v1409 = vstv %s1408
    %v1410 = vmul.f32 %v1409, %v375
    %s1411 = sld [smem:[#allocation2 + $0xd]]
    %v1412 = vstv %s1411
    %v1413 = vmul.f32 %v1412, %v1340
    %v1414 = vadd.f32 %v1410, %v1413
    %s1415 = sld [smem:[#allocation2 + $0x16]]
    %v1416 = vstv %s1415
    %v1417 = vmul.f32 %v1416, %v1343
    %v1418 = vadd.f32 %v1414, %v1417
    %s1419 = sld [smem:[#allocation2 + $0x1f]]
    %v1420 = vstv %s1419
    %v1421 = vmul.f32 %v1420, %v1337
    %v1422 = vadd.f32 %v1418, %v1421
    %v1423 = vadd.f32 %v1407, %v1422
    %s1424 = sld [smem:[#allocation2 + $0x5]]
    %v1425 = vstv %s1424
    %v1426 = vmul.f32 %v1425, %v583
    %s1427 = sld [smem:[#allocation2 + $0xe]]
    %v1428 = vstv %s1427
    %v1429 = vmul.f32 %v1428, %v1341
    %v1430 = vadd.f32 %v1426, %v1429
    %s1431 = sld [smem:[#allocation2 + $0x17]]
    %v1432 = vstv %s1431
    %v1433 = vmul.f32 %v1432, %v1344
    %v1434 = vadd.f32 %v1430, %v1433
    %s1435 = sld [smem:[#allocation2 + $0x20]]
    %v1436 = vstv %s1435
    %v1437 = vmul.f32 %v1436, %v1338
    %v1438 = vadd.f32 %v1434, %v1437
    %v1439 = vadd.f32 %v1423, %v1438
    %s1440 = scalar_lea.vmem [#allocation9], 8
    %1441 = vst [vmem:[%s1440] sm:$0xff] %v1439
    %s1442 = sld [smem:[#allocation2 + $0x6]]
    %v1443 = vstv %s1442
    %v1444 = vmul.f32 %v1443, %v167
    %s1445 = sld [smem:[#allocation2 + $0xf]]
    %v1446 = vstv %s1445
    %v1447 = vmul.f32 %v1446, %v1339
    %v1448 = vadd.f32 %v1444, %v1447
    %s1449 = sld [smem:[#allocation2 + $0x18]]
    %v1450 = vstv %s1449
    %v1451 = vmul.f32 %v1450, %v1342
    %v1452 = vadd.f32 %v1448, %v1451
    %s1453 = sld [smem:[#allocation2 + $0x21]]
    %v1454 = vstv %s1453
    %v1455 = vmul.f32 %v1454, %v1336
    %v1456 = vadd.f32 %v1452, %v1455
    %s1457 = sld [smem:[#allocation2 + $0x7]]
    %v1458 = vstv %s1457
    %v1459 = vmul.f32 %v1458, %v375
    %s1460 = sld [smem:[#allocation2 + $0x10]]
    %v1461 = vstv %s1460
    %v1462 = vmul.f32 %v1461, %v1340
    %v1463 = vadd.f32 %v1459, %v1462
    %s1464 = sld [smem:[#allocation2 + $0x19]]
    %v1465 = vstv %s1464
    %v1466 = vmul.f32 %v1465, %v1343
    %v1467 = vadd.f32 %v1463, %v1466
    %s1468 = sld [smem:[#allocation2 + $0x22]]
    %v1469 = vstv %s1468
    %v1470 = vmul.f32 %v1469, %v1337
    %v1471 = vadd.f32 %v1467, %v1470
    %v1472 = vadd.f32 %v1456, %v1471
    %s1473 = sld [smem:[#allocation2 + $0x8]]
    %v1474 = vstv %s1473
    %v1475 = vmul.f32 %v1474, %v583
    %s1476 = sld [smem:[#allocation2 + $0x11]]
    %v1477 = vstv %s1476
    %v1478 = vmul.f32 %v1477, %v1341
    %v1479 = vadd.f32 %v1475, %v1478
    %s1480 = sld [smem:[#allocation2 + $0x1a]]
    %v1481 = vstv %s1480
    %v1482 = vmul.f32 %v1481, %v1344
    %v1483 = vadd.f32 %v1479, %v1482
    %s1484 = sld [smem:[#allocation2 + $0x23]]
    %v1485 = vstv %s1484
    %v1486 = vmul.f32 %v1485, %v1338
    %v1487 = vadd.f32 %v1483, %v1486
    %v1488 = vadd.f32 %v1472, %v1487
    %s1489 = scalar_lea.vmem [#allocation9], 16
    %1490 = vst [vmem:[%s1489] sm:$0xff] %v1488
    // Predicated region
    $region26: #{tpu_custom_call.1} parent=1 // pred_check
      _
    $region27: #{tpu_custom_call.1} parent=1 // pred_check_branch
      %1492 = sbr.rel (0) target = $region29
    $region28: #{tpu_custom_call.1} parent=1 // pred_region
      %s1494 = ssub.s32 384, 384
      %1495 = vsyncadd [#allocation4], %s1494
      %s1496 = sshll.u32 [#allocation9], 4
      %s1497 = int_to_ptr.vmem [resolvable:$true] %s1496
      %1502 = dma.vmem_to_hbm [thread:$0]  %s1497, 384, %s3, [#allocation4], 128, 128, 8
    $region29: #{tpu_custom_call.1} parent=1 // pred_fallthru
      _
    // Predicated region
    $region30: #{tpu_custom_call.1} parent=1 // pred_check
      _
    $region31: #{tpu_custom_call.1} parent=1 // pred_check_branch
      %1504 = sbr.rel (0) target = $region33
    $region32: #{tpu_custom_call.1} parent=1 // pred_region
      %1505 = dma.done [#allocation4], 384
    $region33: #{tpu_custom_call.1} parent=1 // pred_fallthru
      _
    %1506 = vsyncpa [#allocation3], 1
    %1507 = vsyncpa [#allocation8], 1
    %1508 = vsyncpa [#allocation4], 1
    %1509 = vsyncpa [#allocation5], 1

</llo_original>
